<compile_context>
chip_gen: v5e
topology: v5e:2x2
jax: 0.10.0
libtpu: 0.0.40
codegen_flags: <defaults>
</compile_context>

<pallas_src>
import jax
import jax.numpy as jnp
from jax import lax
from jax.experimental import pallas as pl
from jax.experimental.pallas import tpu as pltpu

# ----------------------------- model sizes ---------------------------------
B  = 2    # batch
S  = 8    # sequence length (cfg.max_len)
E  = 32   # encoder hidden dim (ESM2 hidden_dim stand-in)
L  = 16   # cfg.latent_dim
ED = 16   # decoder token-embedding dim
H  = 32   # cfg.dec_hidden_dim (single GRU layer)
V  = 24   # vocab size (20 AA + specials)
PH = 32   # cfg.pred_hidden_dim

# --------------------- packed-slab static row offsets ----------------------
# bf16 weight slab (all row offsets multiples of 16 for clean bf16 sublane tiles)
R_ESM   = 0      # esm_emb augmented with attention column   (V, E+1) = (24, 33)
R_DEMB  = 32     # dec_emb @ w_ih (folded)                    (V, 3H) = (24, 96)
R_WHH   = 64     # recurrent gate weights [r|z|n]             (H, 3H) = (32, 96)
R_WMULV = 96     # latent heads [mu|logvar]                   (E, 2L) = (32, 32)
R_WL2H  = 128    # latent -> initial hidden                   (L, H)  = (16, 32)
R_WOUT  = 144    # hidden -> vocab                            (H, V)  = (32, 24)
R_WP1   = 176    # predictor layer 1                          (L, PH) = (16, 32)
R_WP2   = 192    # predictor layer 2 (as a row)               (1, PH) = (1, 32)
W_ROWS  = 208

# f32 bias/eps slab
FR_BIH   = 0     # fused input-gate bias [b_ir+b_hr | b_iz+b_hz | b_in]  (1, 3H)
FR_BHN   = 1     # b_hn                                                   (1, H)
FR_BMULV = 2     # [b_mu | b_logvar]                                      (1, 2L)
FR_BL2H  = 3     # (1, H)
FR_BOUT  = 4     # (1, V)
FR_BP1   = 5     # (1, PH)
FR_SCAL  = 6     # lane0 = b_attn, lane1 = b_p2
FR_EPS   = 8     # reparameterization noise, rows 8:8+B, lanes 0:L
F_ROWS   = 16


def _vmem():
    return pl.BlockSpec(memory_space=pltpu.MemorySpace.VMEM)


# --------------------------- fused forward kernel ---------------------------
def fused_vae_kernel(ids_ref, w_ref, f_ref, small_ref, logits_ref):
    f32 = jnp.float32
    bf16 = jnp.bfloat16

    ids = ids_ref[...]                                         # (B*S, 2) int32
    iota_v = lax.broadcasted_iota(jnp.int32, (B * S, V), 1)    # (B*S, V)

    # ---- unpack bf16 weight slab (static sub-views, loaded once) ----
    esm_aug   = w_ref[R_ESM:R_ESM + V, 0:E + 1]                # (V, E+1)
    w_demb_ih = w_ref[R_DEMB:R_DEMB + V, 0:3 * H]              # (V, 3H)
    w_hh      = w_ref[R_WHH:R_WHH + H, 0:3 * H]                # (H, 3H)
    w_mulv    = w_ref[R_WMULV:R_WMULV + E, 0:2 * L]            # (E, 2L)
    w_l2h     = w_ref[R_WL2H:R_WL2H + L, 0:H]                  # (L, H)
    w_out     = w_ref[R_WOUT:R_WOUT + H, 0:V]                  # (H, V)
    w_p1      = w_ref[R_WP1:R_WP1 + L, 0:PH]                   # (L, PH)
    w_p2      = w_ref[R_WP2:R_WP2 + 1, 0:PH].astype(f32)       # (1, PH)

    # ---- unpack f32 bias slab ----
    b_ih   = f_ref[FR_BIH:FR_BIH + 1, 0:3 * H]                 # (1, 3H)
    b_hn   = f_ref[FR_BHN:FR_BHN + 1, 0:H]                     # (1, H)
    b_mulv = f_ref[FR_BMULV:FR_BMULV + 1, 0:2 * L]             # (1, 2L)
    b_l2h  = f_ref[FR_BL2H:FR_BL2H + 1, 0:H]                   # (1, H)
    b_out  = f_ref[FR_BOUT:FR_BOUT + 1, 0:V]                   # (1, V)
    b_p1   = f_ref[FR_BP1:FR_BP1 + 1, 0:PH]                    # (1, PH)
    b_attn = f_ref[FR_SCAL:FR_SCAL + 1, 0:1]                   # (1, 1)
    b_p2   = f_ref[FR_SCAL:FR_SCAL + 1, 1:2]                   # (1, 1)
    eps    = f_ref[FR_EPS:FR_EPS + B, 0:L]                     # (B, L)

    # -------- encode: one-hot matmul on augmented table; score = column E ---
    onehot_e = (ids[:, 0:1] == iota_v).astype(bf16)            # (B*S, V)
    enc_aug = jnp.dot(onehot_e, esm_aug,
                      preferred_element_type=f32)              # (B*S, E+1)
    enc3 = enc_aug.reshape(B, S, E + 1)
    scores = enc3[:, :, E:E + 1] + b_attn                      # (B, S, 1)
    m = jnp.max(scores, axis=1, keepdims=True)
    ex = jnp.exp(scores - m)
    attn = ex * pl.reciprocal(jnp.sum(ex, axis=1, keepdims=True), approx=True)
    z_rep = jnp.sum(attn * enc3[:, :, 0:E], axis=1)            # (B, E)

    # LatentEncoder heads (fused mu|logvar) + reparameterization
    mulv = jnp.dot(z_rep.astype(bf16), w_mulv,
                   preferred_element_type=f32) + b_mulv        # (B, 2L)
    mu = mulv[:, 0:L]
    lv = mulv[:, L:2 * L]
    z = mu + jnp.exp(0.5 * lv) * eps                           # (B, L)

    # -------- decoder: teacher-forced single-layer GRU over gt ids ----------
    onehot_d = (ids[:, 1:2] == iota_v).astype(bf16)            # (B*S, V)
    # token embedding folded into the input-gate projection: one matmul total
    gx = jnp.dot(onehot_d, w_demb_ih,
                 preferred_element_type=f32) + b_ih            # (B*S, 3H)
    gx3 = gx.reshape(B, S, 3 * H)

    h = jnp.tanh(jnp.dot(z.astype(bf16), w_l2h,
                         preferred_element_type=f32) + b_l2h)  # (B, H)

    hs = []
    for t in range(S):   # static unroll; h_t stays in vregs (no scratch)
        gh = jnp.dot(h.astype(bf16), w_hh,
                     preferred_element_type=f32)               # (B, 3H)
        gxt = gx3[:, t, :]                                     # (B, 3H)
        ru = jax.nn.sigmoid(gxt[:, 0:2 * H] + gh[:, 0:2 * H])
        r = ru[:, 0:H]
        u = ru[:, H:2 * H]
        n = jnp.tanh(gxt[:, 2 * H:3 * H] + r * (gh[:, 2 * H:3 * H] + b_hn))
        h = (1.0 - u) * n + u * h
        hs.append(h)

    # vocab projection hoisted out of the recurrence: one matmul + one store.
    # Row order is t-major ([t, b]); the wrapper fixes layout in one XLA op.
    h_all = jnp.concatenate(hs, axis=0)                        # (S*B, H)
    logits = jnp.dot(h_all.astype(bf16), w_out,
                     preferred_element_type=f32) + b_out       # (S*B, V)
    logits_ref[...] = logits

    # -------- DropoutPredictor (dropout = identity in eval) -----------------
    hp = jnp.maximum(jnp.dot(z.astype(bf16), w_p1,
                             preferred_element_type=f32) + b_p1, 0.0)  # (B,PH)
    prop = jnp.sum(hp * w_p2, axis=-1, keepdims=True) + b_p2   # (B, 1)

    # packed small output: [ z | mu | logvar | prop(broadcast) ]
    prop_blk = prop + jnp.zeros((B, 16), f32)                  # (B, 16)
    small_ref[...] = jnp.concatenate([z, mu, lv, prop_blk], axis=1)   # (B, 64)


# ------------------------------ parameters ----------------------------------
def init_params(key):
    ks = jax.random.split(key, 11)
    sc = 0.1
    nrm = lambda k, s: sc * jax.random.normal(k, s, dtype=jnp.float32)
    return {
        # stand-in embedding for the (untranslatable) pretrained ESM2 encoder
        "esm_emb": nrm(ks[0], (V, E)),
        # glob_attn_module = Linear(E, 1) (+ Softmax over seq)
        "w_attn": nrm(ks[1], (E, 1)), "b_attn": 0.0,
        # LatentEncoder heads
        "w_mu": nrm(ks[2], (E, L)), "b_mu": jnp.zeros((L,), jnp.float32),
        "w_lv": nrm(ks[3], (E, L)), "b_lv": jnp.zeros((L,), jnp.float32),
        # decoder token embedding + GRU (gate order [r | z | n], PyTorch)
        "dec_emb": nrm(ks[4], (V, ED)),
        "w_ih": nrm(ks[5], (ED, 3 * H)), "b_ih": jnp.zeros((3 * H,), jnp.float32),
        "w_hh": nrm(ks[6], (H, 3 * H)),  "b_hh": jnp.zeros((3 * H,), jnp.float32),
        # latent -> initial hidden
        "w_l2h": nrm(ks[7], (L, H)), "b_l2h": jnp.zeros((H,), jnp.float32),
        # hidden -> vocab
        "w_out": nrm(ks[8], (H, V)), "b_out": jnp.zeros((V,), jnp.float32),
        # DropoutPredictor: Linear(L,PH) -> ReLU -> Linear(PH,1)
        "w_p1": nrm(ks[9], (L, PH)), "b_p1": jnp.zeros((PH,), jnp.float32),
        "w_p2": nrm(ks[10], (PH,)), "b_p2": 0.0,
    }


def pack_params(p):
    """Fold + pack all parameters into one bf16 slab and one f32 slab."""
    bf16 = jnp.bfloat16
    w = jnp.zeros((W_ROWS, 128), bf16)

    def put(slab, row, mat):
        return slab.at[row:row + mat.shape[0], 0:mat.shape[1]].set(mat.astype(bf16))

    # attention Linear folded into the encoder table as an extra column
    esm_aug = jnp.concatenate([p["esm_emb"], p["esm_emb"] @ p["w_attn"]], axis=1)
    # decoder token embedding folded into the GRU input-gate projection
    w_demb_ih = p["dec_emb"] @ p["w_ih"]
    w = put(w, R_ESM, esm_aug)
    w = put(w, R_DEMB, w_demb_ih)
    w = put(w, R_WHH, p["w_hh"])
    w = put(w, R_WMULV, jnp.concatenate([p["w_mu"], p["w_lv"]], axis=1))
    w = put(w, R_WL2H, p["w_l2h"])
    w = put(w, R_WOUT, p["w_out"])
    w = put(w, R_WP1, p["w_p1"])
    w = put(w, R_WP2, p["w_p2"].reshape(1, PH))

    f = jnp.zeros((F_ROWS, 128), jnp.float32)
    # fold b_hr / b_hz into the input-gate bias; b_hn stays separate (inside r*(.))
    b_ih_fused = p["b_ih"] + jnp.concatenate(
        [p["b_hh"][0:2 * H], jnp.zeros((H,), jnp.float32)])
    f = f.at[FR_BIH, 0:3 * H].set(b_ih_fused)
    f = f.at[FR_BHN, 0:H].set(p["b_hh"][2 * H:3 * H])
    f = f.at[FR_BMULV, 0:2 * L].set(jnp.concatenate([p["b_mu"], p["b_lv"]]))
    f = f.at[FR_BL2H, 0:H].set(p["b_l2h"])
    f = f.at[FR_BOUT, 0:V].set(p["b_out"])
    f = f.at[FR_BP1, 0:PH].set(p["b_p1"])
    f = f.at[FR_SCAL, 0].set(jnp.float32(p["b_attn"]))
    f = f.at[FR_SCAL, 1].set(jnp.float32(p["b_p2"]))
    return {"w_slab": w, "f_slab": f}


# ------------------------------- forward ------------------------------------
@jax.jit
def gru_vae_forward(packed, enc_ids, input_ids, eps):
    # pack both id tensors into one int32 array; drop eps into the f32 slab
    ids = jnp.stack([enc_ids.reshape(-1), input_ids.reshape(-1)],
                    axis=-1).astype(jnp.int32)                         # (B*S, 2)
    f_slab = packed["f_slab"].at[FR_EPS:FR_EPS + B, 0:L].set(eps)

    small, logits_flat = pl.pallas_call(
        fused_vae_kernel,
        out_shape=(
            jax.ShapeDtypeStruct((B, 64), jnp.float32),      # [z|mu|logvar|prop]
            jax.ShapeDtypeStruct((S * B, V), jnp.float32),   # logits (lane-dense)
        ),
        in_specs=[_vmem(), _vmem(), _vmem()],
        out_specs=(_vmem(), _vmem()),
    )(ids, packed["w_slab"], f_slab)

    z = small[:, 0:L]
    mu = small[:, L:2 * L]
    logvar = small[:, 2 * L:3 * L]
    pred_property = small[:, 3 * L:3 * L + 1]
    # single deferred relayout to the PyTorch convention [batch, vocab, seq]
    logits = jnp.transpose(logits_flat.reshape(S, B, V), (1, 2, 0))

    # matches: (logits, pred_property, mu, logvar, input_ids, latent)
    return logits, pred_property, mu, logvar, input_ids, z


# -------------------------------- driver ------------------------------------
if __name__ == "__main__":
    key = jax.random.PRNGKey(0)
    k_enc, k_dec, k_eps, k_par = jax.random.split(key, 4)

    enc_ids = jax.random.randint(k_enc, (B, S), 0, V, dtype=jnp.int32)
    input_ids = jax.random.randint(k_dec, (B, S), 0, V, dtype=jnp.int32)
    eps = jax.random.normal(k_eps, (B, L), dtype=jnp.float32)
    packed = pack_params(init_params(k_par))

    outs = gru_vae_forward(packed, enc_ids, input_ids, eps)
    outs = jax.block_until_ready(outs)

    logits, pred_prop, mu, logvar, ids, latent = outs
    assert logits.shape == (B, V, S)
    assert pred_prop.shape == (B, 1)
    assert mu.shape == (B, L) and logvar.shape == (B, L)
    assert ids.shape == (B, S) and latent.shape == (B, L)
    assert all(bool(jnp.all(jnp.isfinite(o))) for o in
               (logits, pred_prop, mu, logvar, latent))
    print("KERNEL_OK")
</pallas_src>

<mosaic_0001>
module attributes {stable_mosaic.version = 11 : i64} {
  func.func @fused_vae_kernel(%arg0: memref<16x2xi32, #tpu.memory_space<vmem>>, %arg1: memref<208x128xbf16, #tpu.memory_space<vmem>>, %arg2: memref<16x128xf32, #tpu.memory_space<vmem>>, %arg3: memref<2x64xf32, #tpu.memory_space<vmem>>, %arg4: memref<16x24xf32, #tpu.memory_space<vmem>>) attributes {dimension_semantics = [], scalar_prefetch = 0 : i64, scratch_operands = 0 : i64, tpu.core_type = #tpu.core_type<tc>} {
    %c0 = arith.constant 0 : index
    %c0_0 = arith.constant 0 : index
    %0 = vector.load %arg0[%c0, %c0_0] : memref<16x2xi32, #tpu.memory_space<vmem>>, vector<16x2xi32>
    %1 = tpu.iota {dimensions = array<i32: 1>} : vector<16x24xi32>
    %c0_1 = arith.constant 0 : index
    %c0_2 = arith.constant 0 : index
    %2 = vector.load %arg1[%c0_1, %c0_2] : memref<208x128xbf16, #tpu.memory_space<vmem>>, vector<24x33xbf16>
    %c32 = arith.constant 32 : index
    %c0_3 = arith.constant 0 : index
    %3 = vector.load %arg1[%c32, %c0_3] : memref<208x128xbf16, #tpu.memory_space<vmem>>, vector<24x96xbf16>
    %c64 = arith.constant 64 : index
    %c0_4 = arith.constant 0 : index
    %4 = vector.load %arg1[%c64, %c0_4] : memref<208x128xbf16, #tpu.memory_space<vmem>>, vector<32x96xbf16>
    %c96 = arith.constant 96 : index
    %c0_5 = arith.constant 0 : index
    %5 = vector.load %arg1[%c96, %c0_5] : memref<208x128xbf16, #tpu.memory_space<vmem>>, vector<32x32xbf16>
    %c128 = arith.constant 128 : index
    %c0_6 = arith.constant 0 : index
    %6 = vector.load %arg1[%c128, %c0_6] : memref<208x128xbf16, #tpu.memory_space<vmem>>, vector<16x32xbf16>
    %c144 = arith.constant 144 : index
    %c0_7 = arith.constant 0 : index
    %7 = vector.load %arg1[%c144, %c0_7] : memref<208x128xbf16, #tpu.memory_space<vmem>>, vector<32x24xbf16>
    %c176 = arith.constant 176 : index
    %c0_8 = arith.constant 0 : index
    %8 = vector.load %arg1[%c176, %c0_8] : memref<208x128xbf16, #tpu.memory_space<vmem>>, vector<16x32xbf16>
    %c192 = arith.constant 192 : index
    %c0_9 = arith.constant 0 : index
    %9 = vector.load %arg1[%c192, %c0_9] : memref<208x128xbf16, #tpu.memory_space<vmem>>, vector<1x32xbf16>
    %10 = arith.extf %9 : vector<1x32xbf16> to vector<1x32xf32>
    %c0_10 = arith.constant 0 : index
    %c0_11 = arith.constant 0 : index
    %11 = vector.load %arg2[%c0_10, %c0_11] : memref<16x128xf32, #tpu.memory_space<vmem>>, vector<1x96xf32>
    %c1 = arith.constant 1 : index
    %c0_12 = arith.constant 0 : index
    %12 = vector.load %arg2[%c1, %c0_12] : memref<16x128xf32, #tpu.memory_space<vmem>>, vector<1x32xf32>
    %c2 = arith.constant 2 : index
    %c0_13 = arith.constant 0 : index
    %13 = vector.load %arg2[%c2, %c0_13] : memref<16x128xf32, #tpu.memory_space<vmem>>, vector<1x32xf32>
    %c3 = arith.constant 3 : index
    %c0_14 = arith.constant 0 : index
    %14 = vector.load %arg2[%c3, %c0_14] : memref<16x128xf32, #tpu.memory_space<vmem>>, vector<1x32xf32>
    %c4 = arith.constant 4 : index
    %c0_15 = arith.constant 0 : index
    %15 = vector.load %arg2[%c4, %c0_15] : memref<16x128xf32, #tpu.memory_space<vmem>>, vector<1x24xf32>
    %c5 = arith.constant 5 : index
    %c0_16 = arith.constant 0 : index
    %16 = vector.load %arg2[%c5, %c0_16] : memref<16x128xf32, #tpu.memory_space<vmem>>, vector<1x32xf32>
    %c6 = arith.constant 6 : index
    %c0_17 = arith.constant 0 : index
    %17 = vector.load %arg2[%c6, %c0_17] : memref<16x128xf32, #tpu.memory_space<vmem>>, vector<1x1xf32>
    %c6_18 = arith.constant 6 : index
    %c1_19 = arith.constant 1 : index
    %18 = vector.load %arg2[%c6_18, %c1_19] : memref<16x128xf32, #tpu.memory_space<vmem>>, vector<1x1xf32>
    %c8 = arith.constant 8 : index
    %c0_20 = arith.constant 0 : index
    %19 = vector.load %arg2[%c8, %c0_20] : memref<16x128xf32, #tpu.memory_space<vmem>>, vector<2x16xf32>
    %20 = vector.extract_strided_slice %0 {offsets = [0, 0], sizes = [16, 1], strides = [1, 1]} : vector<16x2xi32> to vector<16x1xi32>
    %21 = vector.broadcast %20 : vector<16x1xi32> to vector<16x24xi32>
    %22 = arith.cmpi eq, %21, %1 : vector<16x24xi32>
    %23 = arith.extui %22 : vector<16x24xi1> to vector<16x24xi32>
    %24 = arith.sitofp %23 : vector<16x24xi32> to vector<16x24xf32>
    %25 = arith.truncf %24 : vector<16x24xf32> to vector<16x24xbf16>
    %cst = arith.constant dense<0.000000e+00> : vector<16x33xf32>
    %26 = tpu.matmul %25, %2, %cst {dimension_numbers = #tpu.dot_dimension_numbers<[1], [0], [0], [1], [0, 0, 1, 1], [], []>} : vector<16x24xbf16>, vector<24x33xbf16>, vector<16x33xf32> -> vector<16x33xf32>
    %27 = vector.shape_cast %26 : vector<16x33xf32> to vector<2x8x33xf32>
    %28 = vector.extract_strided_slice %27 {offsets = [0, 0, 32], sizes = [2, 8, 1], strides = [1, 1, 1]} : vector<2x8x33xf32> to vector<2x8x1xf32>
    %29 = vector.shape_cast %17 : vector<1x1xf32> to vector<1x1x1xf32>
    %30 = vector.broadcast %29 : vector<1x1x1xf32> to vector<2x8x1xf32>
    %31 = arith.addf %28, %30 : vector<2x8x1xf32>
    %cst_21 = arith.constant dense<0xFF800000> : vector<2x1xf32>
    %32 = vector.multi_reduction <maximumf>, %31, %cst_21 [1] : vector<2x8x1xf32> to vector<2x1xf32>
    %33 = vector.shape_cast %32 : vector<2x1xf32> to vector<2x1x1xf32>
    %34 = vector.broadcast %33 : vector<2x1x1xf32> to vector<2x8x1xf32>
    %35 = arith.subf %31, %34 : vector<2x8x1xf32>
    %36 = math.exp %35 : vector<2x8x1xf32>
    %cst_22 = arith.constant dense<0.000000e+00> : vector<2x1xf32>
    %37 = vector.multi_reduction <add>, %36, %cst_22 [1] : vector<2x8x1xf32> to vector<2x1xf32>
    %38 = vector.shape_cast %37 : vector<2x1xf32> to vector<2x1x1xf32>
    %39 = tpu.reciprocal %38 {approx = true} : vector<2x1x1xf32> -> vector<2x1x1xf32>
    %40 = vector.broadcast %39 : vector<2x1x1xf32> to vector<2x8x1xf32>
    %41 = arith.mulf %36, %40 : vector<2x8x1xf32>
    %42 = vector.extract_strided_slice %27 {offsets = [0, 0, 0], sizes = [2, 8, 32], strides = [1, 1, 1]} : vector<2x8x33xf32> to vector<2x8x32xf32>
    %43 = vector.broadcast %41 : vector<2x8x1xf32> to vector<2x8x32xf32>
    %44 = arith.mulf %43, %42 : vector<2x8x32xf32>
    %cst_23 = arith.constant dense<0.000000e+00> : vector<2x32xf32>
    %45 = vector.multi_reduction <add>, %44, %cst_23 [1] : vector<2x8x32xf32> to vector<2x32xf32>
    %46 = arith.truncf %45 : vector<2x32xf32> to vector<2x32xbf16>
    %cst_24 = arith.constant dense<0.000000e+00> : vector<2x32xf32>
    %47 = tpu.matmul %46, %5, %cst_24 {dimension_numbers = #tpu.dot_dimension_numbers<[1], [0], [0], [1], [0, 0, 1, 1], [], []>} : vector<2x32xbf16>, vector<32x32xbf16>, vector<2x32xf32> -> vector<2x32xf32>
    %48 = vector.broadcast %13 : vector<1x32xf32> to vector<2x32xf32>
    %49 = arith.addf %47, %48 : vector<2x32xf32>
    %50 = vector.extract_strided_slice %49 {offsets = [0, 0], sizes = [2, 16], strides = [1, 1]} : vector<2x32xf32> to vector<2x16xf32>
    %51 = vector.extract_strided_slice %49 {offsets = [0, 16], sizes = [2, 16], strides = [1, 1]} : vector<2x32xf32> to vector<2x16xf32>
    %cst_25 = arith.constant 5.000000e-01 : f32
    %52 = vector.broadcast %cst_25 : f32 to vector<2x16xf32>
    %53 = arith.mulf %52, %51 : vector<2x16xf32>
    %54 = math.exp %53 : vector<2x16xf32>
    %55 = arith.mulf %54, %19 : vector<2x16xf32>
    %56 = arith.addf %50, %55 : vector<2x16xf32>
    %57 = vector.extract_strided_slice %0 {offsets = [0, 1], sizes = [16, 1], strides = [1, 1]} : vector<16x2xi32> to vector<16x1xi32>
    %58 = vector.broadcast %57 : vector<16x1xi32> to vector<16x24xi32>
    %59 = arith.cmpi eq, %58, %1 : vector<16x24xi32>
    %60 = arith.extui %59 : vector<16x24xi1> to vector<16x24xi32>
    %61 = arith.sitofp %60 : vector<16x24xi32> to vector<16x24xf32>
    %62 = arith.truncf %61 : vector<16x24xf32> to vector<16x24xbf16>
    %cst_26 = arith.constant dense<0.000000e+00> : vector<16x96xf32>
    %63 = tpu.matmul %62, %3, %cst_26 {dimension_numbers = #tpu.dot_dimension_numbers<[1], [0], [0], [1], [0, 0, 1, 1], [], []>} : vector<16x24xbf16>, vector<24x96xbf16>, vector<16x96xf32> -> vector<16x96xf32>
    %64 = vector.broadcast %11 : vector<1x96xf32> to vector<16x96xf32>
    %65 = arith.addf %63, %64 : vector<16x96xf32>
    %66 = vector.shape_cast %65 : vector<16x96xf32> to vector<2x8x96xf32>
    %67 = arith.truncf %56 : vector<2x16xf32> to vector<2x16xbf16>
    %cst_27 = arith.constant dense<0.000000e+00> : vector<2x32xf32>
    %68 = tpu.matmul %67, %6, %cst_27 {dimension_numbers = #tpu.dot_dimension_numbers<[1], [0], [0], [1], [0, 0, 1, 1], [], []>} : vector<2x16xbf16>, vector<16x32xbf16>, vector<2x32xf32> -> vector<2x32xf32>
    %69 = vector.broadcast %14 : vector<1x32xf32> to vector<2x32xf32>
    %70 = arith.addf %68, %69 : vector<2x32xf32>
    %71 = math.tanh %70 : vector<2x32xf32>
    %72 = arith.truncf %71 : vector<2x32xf32> to vector<2x32xbf16>
    %cst_28 = arith.constant dense<0.000000e+00> : vector<2x96xf32>
    %73 = tpu.matmul %72, %4, %cst_28 {dimension_numbers = #tpu.dot_dimension_numbers<[1], [0], [0], [1], [0, 0, 1, 1], [], []>} : vector<2x32xbf16>, vector<32x96xbf16>, vector<2x96xf32> -> vector<2x96xf32>
    %74 = vector.extract_strided_slice %66 {offsets = [0, 0, 0], sizes = [2, 1, 96], strides = [1, 1, 1]} : vector<2x8x96xf32> to vector<2x1x96xf32>
    %75 = vector.shape_cast %74 : vector<2x1x96xf32> to vector<2x96xf32>
    %76 = vector.extract_strided_slice %75 {offsets = [0, 0], sizes = [2, 64], strides = [1, 1]} : vector<2x96xf32> to vector<2x64xf32>
    %77 = vector.extract_strided_slice %73 {offsets = [0, 0], sizes = [2, 64], strides = [1, 1]} : vector<2x96xf32> to vector<2x64xf32>
    %78 = arith.addf %76, %77 : vector<2x64xf32>
    %79 = arith.negf %78 : vector<2x64xf32>
    %80 = math.exp %79 : vector<2x64xf32>
    %cst_29 = arith.constant 1.000000e+00 : f32
    %81 = vector.broadcast %cst_29 : f32 to vector<2x64xf32>
    %82 = arith.addf %81, %80 : vector<2x64xf32>
    %83 = arith.divf %81, %82 : vector<2x64xf32>
    %84 = vector.extract_strided_slice %83 {offsets = [0, 0], sizes = [2, 32], strides = [1, 1]} : vector<2x64xf32> to vector<2x32xf32>
    %85 = vector.extract_strided_slice %83 {offsets = [0, 32], sizes = [2, 32], strides = [1, 1]} : vector<2x64xf32> to vector<2x32xf32>
    %86 = vector.extract_strided_slice %75 {offsets = [0, 64], sizes = [2, 32], strides = [1, 1]} : vector<2x96xf32> to vector<2x32xf32>
    %87 = vector.extract_strided_slice %73 {offsets = [0, 64], sizes = [2, 32], strides = [1, 1]} : vector<2x96xf32> to vector<2x32xf32>
    %88 = vector.broadcast %12 : vector<1x32xf32> to vector<2x32xf32>
    %89 = arith.addf %87, %88 : vector<2x32xf32>
    %90 = arith.mulf %84, %89 : vector<2x32xf32>
    %91 = arith.addf %86, %90 : vector<2x32xf32>
    %92 = math.tanh %91 : vector<2x32xf32>
    %cst_30 = arith.constant 1.000000e+00 : f32
    %93 = vector.broadcast %cst_30 : f32 to vector<2x32xf32>
    %94 = arith.subf %93, %85 : vector<2x32xf32>
    %95 = arith.mulf %94, %92 : vector<2x32xf32>
    %96 = arith.mulf %85, %71 : vector<2x32xf32>
    %97 = arith.addf %95, %96 : vector<2x32xf32>
    %98 = arith.truncf %97 : vector<2x32xf32> to vector<2x32xbf16>
    %cst_31 = arith.constant dense<0.000000e+00> : vector<2x96xf32>
    %99 = tpu.matmul %98, %4, %cst_31 {dimension_numbers = #tpu.dot_dimension_numbers<[1], [0], [0], [1], [0, 0, 1, 1], [], []>} : vector<2x32xbf16>, vector<32x96xbf16>, vector<2x96xf32> -> vector<2x96xf32>
    %100 = vector.extract_strided_slice %66 {offsets = [0, 1, 0], sizes = [2, 1, 96], strides = [1, 1, 1]} : vector<2x8x96xf32> to vector<2x1x96xf32>
    %101 = vector.shape_cast %100 : vector<2x1x96xf32> to vector<2x96xf32>
    %102 = vector.extract_strided_slice %101 {offsets = [0, 0], sizes = [2, 64], strides = [1, 1]} : vector<2x96xf32> to vector<2x64xf32>
    %103 = vector.extract_strided_slice %99 {offsets = [0, 0], sizes = [2, 64], strides = [1, 1]} : vector<2x96xf32> to vector<2x64xf32>
    %104 = arith.addf %102, %103 : vector<2x64xf32>
    %105 = arith.negf %104 : vector<2x64xf32>
    %106 = math.exp %105 : vector<2x64xf32>
    %cst_32 = arith.constant 1.000000e+00 : f32
    %107 = vector.broadcast %cst_32 : f32 to vector<2x64xf32>
    %108 = arith.addf %107, %106 : vector<2x64xf32>
    %109 = arith.divf %107, %108 : vector<2x64xf32>
    %110 = vector.extract_strided_slice %109 {offsets = [0, 0], sizes = [2, 32], strides = [1, 1]} : vector<2x64xf32> to vector<2x32xf32>
    %111 = vector.extract_strided_slice %109 {offsets = [0, 32], sizes = [2, 32], strides = [1, 1]} : vector<2x64xf32> to vector<2x32xf32>
    %112 = vector.extract_strided_slice %101 {offsets = [0, 64], sizes = [2, 32], strides = [1, 1]} : vector<2x96xf32> to vector<2x32xf32>
    %113 = vector.extract_strided_slice %99 {offsets = [0, 64], sizes = [2, 32], strides = [1, 1]} : vector<2x96xf32> to vector<2x32xf32>
    %114 = vector.broadcast %12 : vector<1x32xf32> to vector<2x32xf32>
    %115 = arith.addf %113, %114 : vector<2x32xf32>
    %116 = arith.mulf %110, %115 : vector<2x32xf32>
    %117 = arith.addf %112, %116 : vector<2x32xf32>
    %118 = math.tanh %117 : vector<2x32xf32>
    %cst_33 = arith.constant 1.000000e+00 : f32
    %119 = vector.broadcast %cst_33 : f32 to vector<2x32xf32>
    %120 = arith.subf %119, %111 : vector<2x32xf32>
    %121 = arith.mulf %120, %118 : vector<2x32xf32>
    %122 = arith.mulf %111, %97 : vector<2x32xf32>
    %123 = arith.addf %121, %122 : vector<2x32xf32>
    %124 = arith.truncf %123 : vector<2x32xf32> to vector<2x32xbf16>
    %cst_34 = arith.constant dense<0.000000e+00> : vector<2x96xf32>
    %125 = tpu.matmul %124, %4, %cst_34 {dimension_numbers = #tpu.dot_dimension_numbers<[1], [0], [0], [1], [0, 0, 1, 1], [], []>} : vector<2x32xbf16>, vector<32x96xbf16>, vector<2x96xf32> -> vector<2x96xf32>
    %126 = vector.extract_strided_slice %66 {offsets = [0, 2, 0], sizes = [2, 1, 96], strides = [1, 1, 1]} : vector<2x8x96xf32> to vector<2x1x96xf32>
    %127 = vector.shape_cast %126 : vector<2x1x96xf32> to vector<2x96xf32>
    %128 = vector.extract_strided_slice %127 {offsets = [0, 0], sizes = [2, 64], strides = [1, 1]} : vector<2x96xf32> to vector<2x64xf32>
    %129 = vector.extract_strided_slice %125 {offsets = [0, 0], sizes = [2, 64], strides = [1, 1]} : vector<2x96xf32> to vector<2x64xf32>
    %130 = arith.addf %128, %129 : vector<2x64xf32>
    %131 = arith.negf %130 : vector<2x64xf32>
    %132 = math.exp %131 : vector<2x64xf32>
    %cst_35 = arith.constant 1.000000e+00 : f32
    %133 = vector.broadcast %cst_35 : f32 to vector<2x64xf32>
    %134 = arith.addf %133, %132 : vector<2x64xf32>
    %135 = arith.divf %133, %134 : vector<2x64xf32>
    %136 = vector.extract_strided_slice %135 {offsets = [0, 0], sizes = [2, 32], strides = [1, 1]} : vector<2x64xf32> to vector<2x32xf32>
    %137 = vector.extract_strided_slice %135 {offsets = [0, 32], sizes = [2, 32], strides = [1, 1]} : vector<2x64xf32> to vector<2x32xf32>
    %138 = vector.extract_strided_slice %127 {offsets = [0, 64], sizes = [2, 32], strides = [1, 1]} : vector<2x96xf32> to vector<2x32xf32>
    %139 = vector.extract_strided_slice %125 {offsets = [0, 64], sizes = [2, 32], strides = [1, 1]} : vector<2x96xf32> to vector<2x32xf32>
    %140 = vector.broadcast %12 : vector<1x32xf32> to vector<2x32xf32>
    %141 = arith.addf %139, %140 : vector<2x32xf32>
    %142 = arith.mulf %136, %141 : vector<2x32xf32>
    %143 = arith.addf %138, %142 : vector<2x32xf32>
    %144 = math.tanh %143 : vector<2x32xf32>
    %cst_36 = arith.constant 1.000000e+00 : f32
    %145 = vector.broadcast %cst_36 : f32 to vector<2x32xf32>
    %146 = arith.subf %145, %137 : vector<2x32xf32>
    %147 = arith.mulf %146, %144 : vector<2x32xf32>
    %148 = arith.mulf %137, %123 : vector<2x32xf32>
    %149 = arith.addf %147, %148 : vector<2x32xf32>
    %150 = arith.truncf %149 : vector<2x32xf32> to vector<2x32xbf16>
    %cst_37 = arith.constant dense<0.000000e+00> : vector<2x96xf32>
    %151 = tpu.matmul %150, %4, %cst_37 {dimension_numbers = #tpu.dot_dimension_numbers<[1], [0], [0], [1], [0, 0, 1, 1], [], []>} : vector<2x32xbf16>, vector<32x96xbf16>, vector<2x96xf32> -> vector<2x96xf32>
    %152 = vector.extract_strided_slice %66 {offsets = [0, 3, 0], sizes = [2, 1, 96], strides = [1, 1, 1]} : vector<2x8x96xf32> to vector<2x1x96xf32>
    %153 = vector.shape_cast %152 : vector<2x1x96xf32> to vector<2x96xf32>
    %154 = vector.extract_strided_slice %153 {offsets = [0, 0], sizes = [2, 64], strides = [1, 1]} : vector<2x96xf32> to vector<2x64xf32>
    %155 = vector.extract_strided_slice %151 {offsets = [0, 0], sizes = [2, 64], strides = [1, 1]} : vector<2x96xf32> to vector<2x64xf32>
    %156 = arith.addf %154, %155 : vector<2x64xf32>
    %157 = arith.negf %156 : vector<2x64xf32>
    %158 = math.exp %157 : vector<2x64xf32>
    %cst_38 = arith.constant 1.000000e+00 : f32
    %159 = vector.broadcast %cst_38 : f32 to vector<2x64xf32>
    %160 = arith.addf %159, %158 : vector<2x64xf32>
    %161 = arith.divf %159, %160 : vector<2x64xf32>
    %162 = vector.extract_strided_slice %161 {offsets = [0, 0], sizes = [2, 32], strides = [1, 1]} : vector<2x64xf32> to vector<2x32xf32>
    %163 = vector.extract_strided_slice %161 {offsets = [0, 32], sizes = [2, 32], strides = [1, 1]} : vector<2x64xf32> to vector<2x32xf32>
    %164 = vector.extract_strided_slice %153 {offsets = [0, 64], sizes = [2, 32], strides = [1, 1]} : vector<2x96xf32> to vector<2x32xf32>
    %165 = vector.extract_strided_slice %151 {offsets = [0, 64], sizes = [2, 32], strides = [1, 1]} : vector<2x96xf32> to vector<2x32xf32>
    %166 = vector.broadcast %12 : vector<1x32xf32> to vector<2x32xf32>
    %167 = arith.addf %165, %166 : vector<2x32xf32>
    %168 = arith.mulf %162, %167 : vector<2x32xf32>
    %169 = arith.addf %164, %168 : vector<2x32xf32>
    %170 = math.tanh %169 : vector<2x32xf32>
    %cst_39 = arith.constant 1.000000e+00 : f32
    %171 = vector.broadcast %cst_39 : f32 to vector<2x32xf32>
    %172 = arith.subf %171, %163 : vector<2x32xf32>
    %173 = arith.mulf %172, %170 : vector<2x32xf32>
    %174 = arith.mulf %163, %149 : vector<2x32xf32>
    %175 = arith.addf %173, %174 : vector<2x32xf32>
    %176 = arith.truncf %175 : vector<2x32xf32> to vector<2x32xbf16>
    %cst_40 = arith.constant dense<0.000000e+00> : vector<2x96xf32>
    %177 = tpu.matmul %176, %4, %cst_40 {dimension_numbers = #tpu.dot_dimension_numbers<[1], [0], [0], [1], [0, 0, 1, 1], [], []>} : vector<2x32xbf16>, vector<32x96xbf16>, vector<2x96xf32> -> vector<2x96xf32>
    %178 = vector.extract_strided_slice %66 {offsets = [0, 4, 0], sizes = [2, 1, 96], strides = [1, 1, 1]} : vector<2x8x96xf32> to vector<2x1x96xf32>
    %179 = vector.shape_cast %178 : vector<2x1x96xf32> to vector<2x96xf32>
    %180 = vector.extract_strided_slice %179 {offsets = [0, 0], sizes = [2, 64], strides = [1, 1]} : vector<2x96xf32> to vector<2x64xf32>
    %181 = vector.extract_strided_slice %177 {offsets = [0, 0], sizes = [2, 64], strides = [1, 1]} : vector<2x96xf32> to vector<2x64xf32>
    %182 = arith.addf %180, %181 : vector<2x64xf32>
    %183 = arith.negf %182 : vector<2x64xf32>
    %184 = math.exp %183 : vector<2x64xf32>
    %cst_41 = arith.constant 1.000000e+00 : f32
    %185 = vector.broadcast %cst_41 : f32 to vector<2x64xf32>
    %186 = arith.addf %185, %184 : vector<2x64xf32>
    %187 = arith.divf %185, %186 : vector<2x64xf32>
    %188 = vector.extract_strided_slice %187 {offsets = [0, 0], sizes = [2, 32], strides = [1, 1]} : vector<2x64xf32> to vector<2x32xf32>
    %189 = vector.extract_strided_slice %187 {offsets = [0, 32], sizes = [2, 32], strides = [1, 1]} : vector<2x64xf32> to vector<2x32xf32>
    %190 = vector.extract_strided_slice %179 {offsets = [0, 64], sizes = [2, 32], strides = [1, 1]} : vector<2x96xf32> to vector<2x32xf32>
    %191 = vector.extract_strided_slice %177 {offsets = [0, 64], sizes = [2, 32], strides = [1, 1]} : vector<2x96xf32> to vector<2x32xf32>
    %192 = vector.broadcast %12 : vector<1x32xf32> to vector<2x32xf32>
    %193 = arith.addf %191, %192 : vector<2x32xf32>
    %194 = arith.mulf %188, %193 : vector<2x32xf32>
    %195 = arith.addf %190, %194 : vector<2x32xf32>
    %196 = math.tanh %195 : vector<2x32xf32>
    %cst_42 = arith.constant 1.000000e+00 : f32
    %197 = vector.broadcast %cst_42 : f32 to vector<2x32xf32>
    %198 = arith.subf %197, %189 : vector<2x32xf32>
    %199 = arith.mulf %198, %196 : vector<2x32xf32>
    %200 = arith.mulf %189, %175 : vector<2x32xf32>
    %201 = arith.addf %199, %200 : vector<2x32xf32>
    %202 = arith.truncf %201 : vector<2x32xf32> to vector<2x32xbf16>
    %cst_43 = arith.constant dense<0.000000e+00> : vector<2x96xf32>
    %203 = tpu.matmul %202, %4, %cst_43 {dimension_numbers = #tpu.dot_dimension_numbers<[1], [0], [0], [1], [0, 0, 1, 1], [], []>} : vector<2x32xbf16>, vector<32x96xbf16>, vector<2x96xf32> -> vector<2x96xf32>
    %204 = vector.extract_strided_slice %66 {offsets = [0, 5, 0], sizes = [2, 1, 96], strides = [1, 1, 1]} : vector<2x8x96xf32> to vector<2x1x96xf32>
    %205 = vector.shape_cast %204 : vector<2x1x96xf32> to vector<2x96xf32>
    %206 = vector.extract_strided_slice %205 {offsets = [0, 0], sizes = [2, 64], strides = [1, 1]} : vector<2x96xf32> to vector<2x64xf32>
    %207 = vector.extract_strided_slice %203 {offsets = [0, 0], sizes = [2, 64], strides = [1, 1]} : vector<2x96xf32> to vector<2x64xf32>
    %208 = arith.addf %206, %207 : vector<2x64xf32>
    %209 = arith.negf %208 : vector<2x64xf32>
    %210 = math.exp %209 : vector<2x64xf32>
    %cst_44 = arith.constant 1.000000e+00 : f32
    %211 = vector.broadcast %cst_44 : f32 to vector<2x64xf32>
    %212 = arith.addf %211, %210 : vector<2x64xf32>
    %213 = arith.divf %211, %212 : vector<2x64xf32>
    %214 = vector.extract_strided_slice %213 {offsets = [0, 0], sizes = [2, 32], strides = [1, 1]} : vector<2x64xf32> to vector<2x32xf32>
    %215 = vector.extract_strided_slice %213 {offsets = [0, 32], sizes = [2, 32], strides = [1, 1]} : vector<2x64xf32> to vector<2x32xf32>
    %216 = vector.extract_strided_slice %205 {offsets = [0, 64], sizes = [2, 32], strides = [1, 1]} : vector<2x96xf32> to vector<2x32xf32>
    %217 = vector.extract_strided_slice %203 {offsets = [0, 64], sizes = [2, 32], strides = [1, 1]} : vector<2x96xf32> to vector<2x32xf32>
    %218 = vector.broadcast %12 : vector<1x32xf32> to vector<2x32xf32>
    %219 = arith.addf %217, %218 : vector<2x32xf32>
    %220 = arith.mulf %214, %219 : vector<2x32xf32>
    %221 = arith.addf %216, %220 : vector<2x32xf32>
    %222 = math.tanh %221 : vector<2x32xf32>
    %cst_45 = arith.constant 1.000000e+00 : f32
    %223 = vector.broadcast %cst_45 : f32 to vector<2x32xf32>
    %224 = arith.subf %223, %215 : vector<2x32xf32>
    %225 = arith.mulf %224, %222 : vector<2x32xf32>
    %226 = arith.mulf %215, %201 : vector<2x32xf32>
    %227 = arith.addf %225, %226 : vector<2x32xf32>
    %228 = arith.truncf %227 : vector<2x32xf32> to vector<2x32xbf16>
    %cst_46 = arith.constant dense<0.000000e+00> : vector<2x96xf32>
    %229 = tpu.matmul %228, %4, %cst_46 {dimension_numbers = #tpu.dot_dimension_numbers<[1], [0], [0], [1], [0, 0, 1, 1], [], []>} : vector<2x32xbf16>, vector<32x96xbf16>, vector<2x96xf32> -> vector<2x96xf32>
    %230 = vector.extract_strided_slice %66 {offsets = [0, 6, 0], sizes = [2, 1, 96], strides = [1, 1, 1]} : vector<2x8x96xf32> to vector<2x1x96xf32>
    %231 = vector.shape_cast %230 : vector<2x1x96xf32> to vector<2x96xf32>
    %232 = vector.extract_strided_slice %231 {offsets = [0, 0], sizes = [2, 64], strides = [1, 1]} : vector<2x96xf32> to vector<2x64xf32>
    %233 = vector.extract_strided_slice %229 {offsets = [0, 0], sizes = [2, 64], strides = [1, 1]} : vector<2x96xf32> to vector<2x64xf32>
    %234 = arith.addf %232, %233 : vector<2x64xf32>
    %235 = arith.negf %234 : vector<2x64xf32>
    %236 = math.exp %235 : vector<2x64xf32>
    %cst_47 = arith.constant 1.000000e+00 : f32
    %237 = vector.broadcast %cst_47 : f32 to vector<2x64xf32>
    %238 = arith.addf %237, %236 : vector<2x64xf32>
    %239 = arith.divf %237, %238 : vector<2x64xf32>
    %240 = vector.extract_strided_slice %239 {offsets = [0, 0], sizes = [2, 32], strides = [1, 1]} : vector<2x64xf32> to vector<2x32xf32>
    %241 = vector.extract_strided_slice %239 {offsets = [0, 32], sizes = [2, 32], strides = [1, 1]} : vector<2x64xf32> to vector<2x32xf32>
    %242 = vector.extract_strided_slice %231 {offsets = [0, 64], sizes = [2, 32], strides = [1, 1]} : vector<2x96xf32> to vector<2x32xf32>
    %243 = vector.extract_strided_slice %229 {offsets = [0, 64], sizes = [2, 32], strides = [1, 1]} : vector<2x96xf32> to vector<2x32xf32>
    %244 = vector.broadcast %12 : vector<1x32xf32> to vector<2x32xf32>
    %245 = arith.addf %243, %244 : vector<2x32xf32>
    %246 = arith.mulf %240, %245 : vector<2x32xf32>
    %247 = arith.addf %242, %246 : vector<2x32xf32>
    %248 = math.tanh %247 : vector<2x32xf32>
    %cst_48 = arith.constant 1.000000e+00 : f32
    %249 = vector.broadcast %cst_48 : f32 to vector<2x32xf32>
    %250 = arith.subf %249, %241 : vector<2x32xf32>
    %251 = arith.mulf %250, %248 : vector<2x32xf32>
    %252 = arith.mulf %241, %227 : vector<2x32xf32>
    %253 = arith.addf %251, %252 : vector<2x32xf32>
    %254 = arith.truncf %253 : vector<2x32xf32> to vector<2x32xbf16>
    %cst_49 = arith.constant dense<0.000000e+00> : vector<2x96xf32>
    %255 = tpu.matmul %254, %4, %cst_49 {dimension_numbers = #tpu.dot_dimension_numbers<[1], [0], [0], [1], [0, 0, 1, 1], [], []>} : vector<2x32xbf16>, vector<32x96xbf16>, vector<2x96xf32> -> vector<2x96xf32>
    %256 = vector.extract_strided_slice %66 {offsets = [0, 7, 0], sizes = [2, 1, 96], strides = [1, 1, 1]} : vector<2x8x96xf32> to vector<2x1x96xf32>
    %257 = vector.shape_cast %256 : vector<2x1x96xf32> to vector<2x96xf32>
    %258 = vector.extract_strided_slice %257 {offsets = [0, 0], sizes = [2, 64], strides = [1, 1]} : vector<2x96xf32> to vector<2x64xf32>
    %259 = vector.extract_strided_slice %255 {offsets = [0, 0], sizes = [2, 64], strides = [1, 1]} : vector<2x96xf32> to vector<2x64xf32>
    %260 = arith.addf %258, %259 : vector<2x64xf32>
    %261 = arith.negf %260 : vector<2x64xf32>
    %262 = math.exp %261 : vector<2x64xf32>
    %cst_50 = arith.constant 1.000000e+00 : f32
    %263 = vector.broadcast %cst_50 : f32 to vector<2x64xf32>
    %264 = arith.addf %263, %262 : vector<2x64xf32>
    %265 = arith.divf %263, %264 : vector<2x64xf32>
    %266 = vector.extract_strided_slice %265 {offsets = [0, 0], sizes = [2, 32], strides = [1, 1]} : vector<2x64xf32> to vector<2x32xf32>
    %267 = vector.extract_strided_slice %265 {offsets = [0, 32], sizes = [2, 32], strides = [1, 1]} : vector<2x64xf32> to vector<2x32xf32>
    %268 = vector.extract_strided_slice %257 {offsets = [0, 64], sizes = [2, 32], strides = [1, 1]} : vector<2x96xf32> to vector<2x32xf32>
    %269 = vector.extract_strided_slice %255 {offsets = [0, 64], sizes = [2, 32], strides = [1, 1]} : vector<2x96xf32> to vector<2x32xf32>
    %270 = vector.broadcast %12 : vector<1x32xf32> to vector<2x32xf32>
    %271 = arith.addf %269, %270 : vector<2x32xf32>
    %272 = arith.mulf %266, %271 : vector<2x32xf32>
    %273 = arith.addf %268, %272 : vector<2x32xf32>
    %274 = math.tanh %273 : vector<2x32xf32>
    %cst_51 = arith.constant 1.000000e+00 : f32
    %275 = vector.broadcast %cst_51 : f32 to vector<2x32xf32>
    %276 = arith.subf %275, %267 : vector<2x32xf32>
    %277 = arith.mulf %276, %274 : vector<2x32xf32>
    %278 = arith.mulf %267, %253 : vector<2x32xf32>
    %279 = arith.addf %277, %278 : vector<2x32xf32>
    %280 = tpu.concatenate %97, %123, %149, %175, %201, %227, %253, %279 in 0 : vector<2x32xf32>, vector<2x32xf32>, vector<2x32xf32>, vector<2x32xf32>, vector<2x32xf32>, vector<2x32xf32>, vector<2x32xf32>, vector<2x32xf32> -> vector<16x32xf32>
    %281 = arith.truncf %280 : vector<16x32xf32> to vector<16x32xbf16>
    %cst_52 = arith.constant dense<0.000000e+00> : vector<16x24xf32>
    %282 = tpu.matmul %281, %7, %cst_52 {dimension_numbers = #tpu.dot_dimension_numbers<[1], [0], [0], [1], [0, 0, 1, 1], [], []>} : vector<16x32xbf16>, vector<32x24xbf16>, vector<16x24xf32> -> vector<16x24xf32>
    %283 = vector.broadcast %15 : vector<1x24xf32> to vector<16x24xf32>
    %284 = arith.addf %282, %283 : vector<16x24xf32>
    %c0_53 = arith.constant 0 : index
    %c0_54 = arith.constant 0 : index
    %285 = vector.load %arg4[%c0_53, %c0_54] : memref<16x24xf32, #tpu.memory_space<vmem>>, vector<16x24xf32>
    tpu.vector_store %arg4[%c0_53, %c0_54], %284 {strides = array<i32>} : memref<16x24xf32, #tpu.memory_space<vmem>>, vector<16x24xf32>,
    %286 = arith.truncf %56 : vector<2x16xf32> to vector<2x16xbf16>
    %cst_55 = arith.constant dense<0.000000e+00> : vector<2x32xf32>
    %287 = tpu.matmul %286, %8, %cst_55 {dimension_numbers = #tpu.dot_dimension_numbers<[1], [0], [0], [1], [0, 0, 1, 1], [], []>} : vector<2x16xbf16>, vector<16x32xbf16>, vector<2x32xf32> -> vector<2x32xf32>
    %288 = vector.broadcast %16 : vector<1x32xf32> to vector<2x32xf32>
    %289 = arith.addf %287, %288 : vector<2x32xf32>
    %cst_56 = arith.constant 0.000000e+00 : f32
    %290 = vector.broadcast %cst_56 : f32 to vector<2x32xf32>
    %291 = arith.maximumf %289, %290 : vector<2x32xf32>
    %292 = vector.broadcast %10 : vector<1x32xf32> to vector<2x32xf32>
    %293 = arith.mulf %291, %292 : vector<2x32xf32>
    %cst_57 = arith.constant dense<0.000000e+00> : vector<2xf32>
    %294 = vector.multi_reduction <add>, %293, %cst_57 [1] : vector<2x32xf32> to vector<2xf32>
    %295 = vector.shape_cast %294 : vector<2xf32> to vector<2x1xf32>
    %296 = vector.broadcast %18 : vector<1x1xf32> to vector<2x1xf32>
    %297 = arith.addf %295, %296 : vector<2x1xf32>
    %cst_58 = arith.constant 0.000000e+00 : f32
    %298 = vector.broadcast %cst_58 : f32 to vector<2x16xf32>
    %299 = vector.broadcast %297 : vector<2x1xf32> to vector<2x16xf32>
    %300 = arith.addf %299, %298 : vector<2x16xf32>
    %301 = tpu.concatenate %56, %50, %51, %300 in 1 : vector<2x16xf32>, vector<2x16xf32>, vector<2x16xf32>, vector<2x16xf32> -> vector<2x64xf32>
    %c0_59 = arith.constant 0 : index
    %c0_60 = arith.constant 0 : index
    %302 = vector.load %arg3[%c0_59, %c0_60] : memref<2x64xf32, #tpu.memory_space<vmem>>, vector<2x64xf32>
    tpu.vector_store %arg3[%c0_59, %c0_60], %301 {strides = array<i32>} : memref<2x64xf32, #tpu.memory_space<vmem>>, vector<2x64xf32>,
    return
  }
}

</mosaic_0001>

<llo_original>
// kernel: gru_vae_forward.1
$region0: #{gru_vae_forward.1}
  #allocation0 [shape = 'u32[]', space=smem, size = 0x4, offset = 0x4, fixed_abs, tag = 'smem constant byte address 0x4 - core index']
  #allocation1 [shape = 'u32[72,128]{1,0:T(1,128)}', space=vmem, size = 0x9000, scoped, tag = 'internal scratch']
  %s0 = inlined_call_operand.vmem [shape: s32[16,2], index: 0, kind: input, shape index: {}]
  %s1 = inlined_call_operand.hbm [shape: bf16[208,128], index: 1, kind: input, shape index: {}]
  %s2 = inlined_call_operand.vmem [shape: f32[16,128], index: 2, kind: input, shape index: {}]
  %s3 = inlined_call_operand.vmem [shape: f32[2,64], index: 3, kind: output, shape index: {0}]
  %s4 = inlined_call_operand.vmem [shape: f32[16,24], index: 4, kind: output, shape index: {1}]
  %5 = xla_tuple %s3, %s4
  %s6 = sld [smem:[#allocation0]]
  $region34: #{gru_vae_forward.1} parent=0
    _
  %s8 = ssub.s32 1, %s6
  %s9 = scalar_select 0, %s8, %s6
  $region1: #{gru_vae_forward.1} parent=0
    #allocation2 [shape = 'u8[53248]{0}', space=vmem, size = 0xd000, scoped, tag = 'input window, operand 1, single buffered']
    #allocation3 [shape = 's32[1]{0}', space=sflag, size = 0x4, scoped, tag = 'scoped memory for gru_vae_forward.1']
    %10 = vsyncpa [#allocation3], 0
    // Predicated region
    $region2: #{gru_vae_forward.1} parent=1 // pred_check
      _
    $region3: #{gru_vae_forward.1} parent=1 // pred_check_branch
      %12 = sbr.rel (0) target = $region5
    $region4: #{gru_vae_forward.1} parent=1 // pred_region
      _
    $region5: #{gru_vae_forward.1} parent=1 // pred_fallthru
      _
    // Predicated region
    $region6: #{gru_vae_forward.1} parent=1 // pred_check
      _
    $region7: #{gru_vae_forward.1} parent=1 // pred_check_branch
      %14 = sbr.rel (0) target = $region9
    $region8: #{gru_vae_forward.1} parent=1 // pred_region
      %16 = vsyncadd [#allocation3], 0
      %s17 = sshll.u32 %s1, 4
      %s18 = int_to_ptr.hbm [resolvable:$true] %s17
      %s19 = sshll.u32 [#allocation2], 4
      %s20 = int_to_ptr.vmem [resolvable:$true] %s19
      %25 = dma.hbm_to_vmem [thread:$0]  %s18, 1664, %s20, [#allocation3], 64, 64, 4
    $region9: #{gru_vae_forward.1} parent=1 // pred_fallthru
      _
    // Predicated region
    $region10: #{gru_vae_forward.1} parent=1 // pred_check
      _
    $region11: #{gru_vae_forward.1} parent=1 // pred_check_branch
      %27 = sbr.rel (0) target = $region13
    $region12: #{gru_vae_forward.1} parent=1 // pred_region
      _
    $region13: #{gru_vae_forward.1} parent=1 // pred_fallthru
      _
    // Predicated region
    $region14: #{gru_vae_forward.1} parent=1 // pred_check
      _
    $region15: #{gru_vae_forward.1} parent=1 // pred_check_branch
      %29 = sbr.rel (0) target = $region17
    $region16: #{gru_vae_forward.1} parent=1 // pred_region
      %31 = dma.done [#allocation3], 1664
    $region17: #{gru_vae_forward.1} parent=1 // pred_fallthru
      _
    %v33 = vld [vmem:[%s0] sm:$0xff]
    %v34 = vld [vmem:[%s0 + $0x8] sm:$0xff]
    %v35 = vlaneseq
    %v36 = vand.u32 %v35, 127
    %v37 = vld [vmem:[#allocation2] sm:$0xf]
    %v38 = vld [vmem:[#allocation2 + $0x4] sm:$0xf]
    %v39 = vld [vmem:[#allocation2 + $0x8] sm:$0xf]
    %v40 = vld [vmem:[#allocation2 + $0x10] sm:$0xf]
    %v41 = vld [vmem:[#allocation2 + $0x14] sm:$0xf]
    %v42 = vld [vmem:[#allocation2 + $0x18] sm:$0xf]
    %v43 = vld [vmem:[#allocation2 + $0x20] sm:$0xf]
    %v44 = vld [vmem:[#allocation2 + $0x24] sm:$0xf]
    %v45 = vld [vmem:[#allocation2 + $0x28] sm:$0xf]
    %v46 = vld [vmem:[#allocation2 + $0x2c] sm:$0xf]
    %v47 = vld [vmem:[#allocation2 + $0x30] sm:$0xf]
    %v48 = vld [vmem:[#allocation2 + $0x34] sm:$0xf]
    %v49 = vld [vmem:[#allocation2 + $0x38] sm:$0xf]
    %v50 = vld [vmem:[#allocation2 + $0x3c] sm:$0xf]
    %v51 = vld [vmem:[#allocation2 + $0x40] sm:$0xf]
    %v52 = vld [vmem:[#allocation2 + $0x44] sm:$0xf]
    %v53 = vld [vmem:[#allocation2 + $0x48] sm:$0xf]
    %v54 = vld [vmem:[#allocation2 + $0x4c] sm:$0xf]
    %v55 = vld [vmem:[#allocation2 + $0x50] sm:$0xf]
    %v56 = vld [vmem:[#allocation2 + $0x54] sm:$0xf]
    %v57 = vld [vmem:[#allocation2 + $0x58] sm:$0xf]
    %v58 = vld [vmem:[#allocation2 + $0x5c] sm:$0xf]
    %v59 = vld [vmem:[#allocation2 + $0x60] sm:$0x1]
    %v60 = vunpack.c.l.bf16 %v59
    %v61 = vld [vmem:[%s2] sm:$0x1]
    %v62 = vld [vmem:[%s2 + $0x1] sm:$0x1]
    %v63 = vld [vmem:[%s2 + $0x2] sm:$0x1]
    %v64 = vld [vmem:[%s2 + $0x3] sm:$0x1]
    %v65 = vld [vmem:[%s2 + $0x4] sm:$0x1]
    %v66 = vld [vmem:[%s2 + $0x5] sm:$0x1]
    %v67 = vld [vmem:[%s2 + $0x6] sm:$0x1]
    %v68 = vld [vmem:[%s2 + $0x8] sm:$0x3]
    %69 = vset.pattern.permute.xlu0 0
    %70 = vperm.xlu0 %69, %v33
    %v71 = vpop.permute.xlu0 %70
    %72 = vset.pattern.permute.xlu0 0
    %73 = vperm.xlu0 %72, %v34
    %v74 = vpop.permute.xlu0 %73
    %vm75 = vcmp.eq.s32.totalorder %v71, %v36
    %vm76 = vcmp.eq.s32.totalorder %v74, %v36
    %v77 = vsel %vm75, 1, 0
    %v78 = vsel %vm76, 1, 0
    %v79 = vcvt.s32.f32 %v77
    %v80 = vcvt.s32.f32 %v78
    %v81 = vpack.c.bf16 %v80, %v79
    %v85 = vunpack.c.l.b16 %v37
    %v86 = vunpack.c.l.b16 %v38
    %v87 = vunpack.c.l.b16 %v39
    %v88 = vpack.c.b16 %v86, %v85
    %v89 = vpack.c.b16 %v87, %v87
    %vm91 = vcmask 195584
    %v93 = vsel %vm91, %v81, 0
    %vm95 = vcmask 1043456
    %v97 = vsel %vm95, %v89, 0
    %99 = vmatpush.bf16.msra.mxu0 0
    %100 = vmatpush.bf16.msra.mxu0 0
    %101 = vmatpush.bf16.msra.mxu0 0
    %102 = vmatpush.bf16.msra.mxu0 0
    %103 = vmatpush.bf16.msra.mxu0 0
    %104 = vmatpush.bf16.msra.mxu0 0
    %105 = vmatpush.bf16.msra.mxu0 %v97
    %106 = vmatpush.bf16.msra.mxu0 %v88
    %107 = vmatmul.bf16.gmra.mxu0 %v93
    %v108 = vpop.f32.mrf.mxu0
    %v109 = vadd.f32 0.0, %v108
    %v110 = vpop.f32.mrf.mxu0
    %v111 = vadd.f32 0.0, %v110
    %112 = vdwg.mxu0
    %v113 = vperm.slane %v67, 0
    %115 = vrot.lane.b32.xlu0 %v113, 32
    %v116 = vpop.permute.xlu0 %115
    %v118 = vadd.f32 %v109, %v116
    %v119 = vadd.f32 %v111, %v116
    %vm120 = vcmask 269568
    %v121 = vsel %vm120, %v118, -inf
    %v122 = vrot.slane %v121, 4
    %v123 = vmax.f32 %v121, %v122
    %v124 = vrot.slane %v123, 2
    %v125 = vmax.f32 %v123, %v124
    %v126 = vrot.slane %v125, 1
    %v127 = vmax.f32 %v125, %v126
    %v128 = vsel %vm120, %v119, -inf
    %v129 = vrot.slane %v128, 4
    %v130 = vmax.f32 %v128, %v129
    %v131 = vrot.slane %v130, 2
    %v132 = vmax.f32 %v130, %v131
    %v133 = vrot.slane %v132, 1
    %v134 = vmax.f32 %v132, %v133
    %v135 = vsub.f32 %v118, %v127
    %v136 = vsub.f32 %v119, %v134
    %v137 = vmul.f32 %v135, 1.442695
    %v138 = vpow.pop %v137
    %v139 = vmul.f32 %v136, 1.442695
    %v140 = vpow.pop %v139
    %v141 = vsel %vm120, %v138, 0.0
    %v142 = vrot.slane %v141, 4
    %v143 = vadd.f32 %v141, %v142
    %v144 = vrot.slane %v143, 2
    %v145 = vadd.f32 %v143, %v144
    %v146 = vrot.slane %v145, 1
    %v147 = vadd.f32 %v145, %v146
    %v148 = vsel %vm120, %v140, 0.0
    %v149 = vrot.slane %v148, 4
    %v150 = vadd.f32 %v148, %v149
    %v151 = vrot.slane %v150, 2
    %v152 = vadd.f32 %v150, %v151
    %v153 = vrot.slane %v152, 1
    %v154 = vadd.f32 %v152, %v153
    %v155 = vrcp.pop %v147
    %v156 = vrcp.pop %v154
    %v157 = vmul.f32 %v138, %v155
    %v158 = vmul.f32 %v140, %v156
    %160 = vset.pattern.permute.xlu0 32
    %161 = vperm.xlu0 %160, %v157
    %v162 = vpop.permute.xlu0 %161
    %165 = vset.pattern.permute.xlu0 32
    %166 = vperm.xlu0 %165, %v158
    %v167 = vpop.permute.xlu0 %166
    %v169 = vmul.f32 %v162, %v109
    %v170 = vmul.f32 %v167, %v111
    %vm171 = vcmask 261120
    %v172 = vsel %vm171, %v169, 0.0
    %v173 = vrot.slane %v172, 4
    %v174 = vadd.f32 %v172, %v173
    %v175 = vrot.slane %v174, 2
    %v176 = vadd.f32 %v174, %v175
    %v177 = vrot.slane %v176, 1
    %v178 = vadd.f32 %v176, %v177
    %v179 = vsel %vm171, %v170, 0.0
    %v180 = vrot.slane %v179, 4
    %v181 = vadd.f32 %v179, %v180
    %v182 = vrot.slane %v181, 2
    %v183 = vadd.f32 %v181, %v182
    %v184 = vrot.slane %v183, 1
    %v185 = vadd.f32 %v183, %v184
    %v186 = vpack.c.bf16 %v178, %v178
    %v187 = vpack.c.bf16 %v185, %v185
    %v188 = vperm.slane %v63, 0
    %v191 = vunpack.c.l.b16 %v186
    %v192 = vunpack.c.l.b16 %v187
    %vm193 = vcmask 1041409
    %v194 = vsel %vm193, %v192, %v191
    %v195 = vpack.c.b16 %v194, %v194
    %v200 = vunpack.c.l.b16 %v47
    %v201 = vunpack.c.l.b16 %v48
    %v202 = vunpack.c.l.b16 %v49
    %v203 = vunpack.c.l.b16 %v50
    %v204 = vpack.c.b16 %v201, %v200
    %v205 = vpack.c.b16 %v203, %v202
    %v209 = vsel %vm171, %v195, 0
    %211 = vmatpush.bf16.msra.mxu0 0
    %212 = vmatpush.bf16.msra.mxu0 0
    %213 = vmatpush.bf16.msra.mxu0 0
    %214 = vmatpush.bf16.msra.mxu0 0
    %215 = vmatpush.bf16.msra.mxu0 0
    %216 = vmatpush.bf16.msra.mxu0 0
    %217 = vmatpush.bf16.msra.mxu0 %v205
    %218 = vmatpush.bf16.msra.mxu0 %v204
    %219 = vmatmul.bf16.gmra.mxu0 %v209
    %v220 = vpop.f32.mrf.mxu0
    %v221 = vadd.f32 %v188, %v220
    %v222 = vpop.f32.mrf.mxu0
    %223 = vdwg.mxu0
    %v224 = vmul.f32 %v221, 0.5
    %v225 = vmul.f32 %v224, 1.442695
    %v226 = vpow.pop %v225
    %228 = vrot.lane.b32.xlu0 %v68, 16
    %v229 = vpop.permute.xlu0 %228
    %v231 = vmul.f32 %v226, %v229
    %233 = vrot.lane.b32.xlu0 %v231, 112
    %v234 = vpop.permute.xlu0 %233
    %v236 = vadd.f32 %v221, %v234
    %237 = vset.pattern.permute.xlu0 1
    %238 = vperm.xlu0 %237, %v33
    %v239 = vpop.permute.xlu0 %238
    %240 = vset.pattern.permute.xlu0 1
    %241 = vperm.xlu0 %240, %v34
    %v242 = vpop.permute.xlu0 %241
    %vm243 = vcmp.eq.s32.totalorder %v239, %v36
    %vm244 = vcmp.eq.s32.totalorder %v242, %v36
    %v245 = vsel %vm243, 1, 0
    %v246 = vsel %vm244, 1, 0
    %v247 = vcvt.s32.f32 %v245
    %v248 = vcvt.s32.f32 %v246
    %v249 = vpack.c.bf16 %v248, %v247
    %v250 = vperm.slane %v61, 0
    %v254 = vunpack.c.l.b16 %v40
    %v255 = vunpack.c.l.b16 %v41
    %v256 = vunpack.c.l.b16 %v42
    %v257 = vpack.c.b16 %v255, %v254
    %v258 = vpack.c.b16 %v256, %v256
    %v261 = vsel %vm91, %v249, 0
    %v264 = vsel %vm95, %v258, 0
    %266 = vmatpush.bf16.msra.mxu0 0
    %267 = vmatpush.bf16.msra.mxu0 0
    %268 = vmatpush.bf16.msra.mxu0 0
    %269 = vmatpush.bf16.msra.mxu0 0
    %270 = vmatpush.bf16.msra.mxu0 0
    %271 = vmatpush.bf16.msra.mxu0 0
    %272 = vmatpush.bf16.msra.mxu0 %v264
    %273 = vmatpush.bf16.msra.mxu0 %v257
    %274 = vmatmul.bf16.gmra.mxu0 %v261
    %v275 = vpop.f32.mrf.mxu0
    %v276 = vadd.f32 %v250, %v275
    %v277 = vpop.f32.mrf.mxu0
    %v278 = vadd.f32 %v250, %v277
    %279 = vdwg.mxu0
    %v280 = vpack.c.bf16 %v236, %v236
    %v281 = vperm.slane %v64, 0
    %v284 = vunpack.c.l.b16 %v51
    %v285 = vunpack.c.l.b16 %v52
    %v286 = vpack.c.b16 %v285, %v284
    %vm288 = vcmask 130048
    %v290 = vsel %vm288, %v280, 0
    %292 = vmatpush.bf16.msra.mxu0 0
    %293 = vmatpush.bf16.msra.mxu0 0
    %294 = vmatpush.bf16.msra.mxu0 0
    %295 = vmatpush.bf16.msra.mxu0 0
    %296 = vmatpush.bf16.msra.mxu0 0
    %297 = vmatpush.bf16.msra.mxu0 0
    %298 = vmatpush.bf16.msra.mxu0 0
    %299 = vmatpush.bf16.msra.mxu0 %v286
    %300 = vmatmul.bf16.gmra.mxu0 %v290
    %v301 = vpop.f32.mrf.mxu0
    %v302 = vadd.f32 %v281, %v301
    %v303 = vpop.f32.mrf.mxu0
    %304 = vdwg.mxu0
    %v305 = vtanh.pop %v302
    %v306 = vpack.c.bf16 %v305, %v305
    %v311 = vunpack.c.l.b16 %v43
    %v312 = vunpack.c.l.b16 %v44
    %v313 = vunpack.c.l.b16 %v45
    %v314 = vunpack.c.l.b16 %v46
    %v315 = vpack.c.b16 %v312, %v311
    %v316 = vpack.c.b16 %v314, %v313
    %v320 = vsel %vm171, %v306, 0
    %322 = vmatpush.bf16.msra.mxu0 0
    %323 = vmatpush.bf16.msra.mxu0 0
    %324 = vmatpush.bf16.msra.mxu0 0
    %325 = vmatpush.bf16.msra.mxu0 0
    %326 = vmatpush.bf16.msra.mxu0 0
    %327 = vmatpush.bf16.msra.mxu0 0
    %328 = vmatpush.bf16.msra.mxu0 %v316
    %329 = vmatpush.bf16.msra.mxu0 %v315
    %330 = vmatmul.bf16.gmra.mxu0 %v320
    %v331 = vpop.f32.mrf.mxu0
    %v332 = vadd.f32 0.0, %v331
    %v333 = vpop.f32.mrf.mxu0
    %334 = vdwg.mxu0
    %v336 = vrot.slane %v332, 1
    %v339 = vadd.f32 %v276, %v332
    %v340 = vadd.f32 %v278, %v336
    %v341 = vxor.u32 %v339, 2147483648
    %v342 = vxor.u32 %v340, 2147483648
    %v343 = vmul.f32 %v341, 1.442695
    %v344 = vpow.pop %v343
    %v345 = vmul.f32 %v342, 1.442695
    %v346 = vpow.pop %v345
    %v347 = vadd.f32 %v344, 1.0
    %v348 = vadd.f32 %v346, 1.0
    %v349 = vrcp.pop %v347
    %v350 = vmul.f32 %v347, %v349
    %v351 = vsub.f32 1.0, %v350
    %v352 = vmul.f32 %v349, %v351
    %v353 = vadd.f32 %v349, %v352
    %vm354 = vweird.f32 %v347
    %vm355 = vweird.f32 %v349
    %vm356 = vmor %vm354, %vm355
    %v357 = vsel %vm356, %v349, %v353
    %v358 = vand.u32 2147483647, %v347
    %vm359 = vcmp.eq.f32.partialorder %v358, 8.507059e+37
    %v360 = vand.u32 %v347, 2147483648
    %v361 = vor.u32 1.1754944e-38, %v360
    %v362 = vsel %vm359, %v361, %v357
    %v363 = vmul.f32 1.0, %v362
    %v364 = vrcp.pop %v348
    %v365 = vmul.f32 %v348, %v364
    %v366 = vsub.f32 1.0, %v365
    %v367 = vmul.f32 %v364, %v366
    %v368 = vadd.f32 %v364, %v367
    %vm369 = vweird.f32 %v348
    %vm370 = vweird.f32 %v364
    %vm371 = vmor %vm369, %vm370
    %v372 = vsel %vm371, %v364, %v368
    %v373 = vand.u32 2147483647, %v348
    %vm374 = vcmp.eq.f32.partialorder %v373, 8.507059e+37
    %v375 = vand.u32 %v348, 2147483648
    %v376 = vor.u32 1.1754944e-38, %v375
    %v377 = vsel %vm374, %v376, %v372
    %v378 = vmul.f32 1.0, %v377
    %v379 = vperm.slane %v62, 0
    %381 = vrot.lane.b32.xlu0 %v379, 64
    %v382 = vpop.permute.xlu0 %381
    %v384 = vadd.f32 %v332, %v382
    %v386 = vrot.slane %v384, 1
    %387 = vrot.lane.b32.xlu0 %v384, 64
    %v388 = vpop.permute.xlu0 %387
    %389 = vrot.lane.b32.xlu0 %v386, 64
    %v390 = vpop.permute.xlu0 %389
    %v393 = vmul.f32 %v363, %v388
    %v394 = vmul.f32 %v378, %v390
    %397 = vrot.lane.b32.xlu0 %v393, 64
    %v398 = vpop.permute.xlu0 %397
    %399 = vrot.lane.b32.xlu0 %v394, 64
    %v400 = vpop.permute.xlu0 %399
    %v403 = vadd.f32 %v276, %v398
    %v404 = vadd.f32 %v278, %v400
    %v405 = vtanh.pop %v403
    %v406 = vtanh.pop %v404
    %v407 = vsub.f32 1.0, %v363
    %v408 = vsub.f32 1.0, %v378
    %411 = vrot.lane.b32.xlu0 %v405, 96
    %v412 = vpop.permute.xlu0 %411
    %413 = vrot.lane.b32.xlu0 %v406, 96
    %v414 = vpop.permute.xlu0 %413
    %v417 = vmul.f32 %v407, %v412
    %v418 = vmul.f32 %v408, %v414
    %v420 = vrot.slane %v305, 1
    %421 = vrot.lane.b32.xlu0 %v305, 32
    %v422 = vpop.permute.xlu0 %421
    %423 = vrot.lane.b32.xlu0 %v420, 32
    %v424 = vpop.permute.xlu0 %423
    %v427 = vmul.f32 %v363, %v422
    %v428 = vmul.f32 %v378, %v424
    %v429 = vadd.f32 %v417, %v427
    %v430 = vadd.f32 %v418, %v428
    %v431 = vpack.c.bf16 %v429, %v429
    %v432 = vpack.c.bf16 %v430, %v430
    %v435 = vunpack.c.l.b16 %v431
    %v436 = vunpack.c.l.b16 %v432
    %v437 = vrot.slane %v436, 7
    %v438 = vsel %vm193, %v437, %v435
    %v439 = vpack.c.b16 %v438, %v438
    %440 = vrot.lane.b32.xlu0 %v439, 96
    %v441 = vpop.permute.xlu0 %440
    %v443 = vsel %vm171, %v441, 0
    %445 = vmatpush.bf16.msra.mxu0 0
    %446 = vmatpush.bf16.msra.mxu0 0
    %447 = vmatpush.bf16.msra.mxu0 0
    %448 = vmatpush.bf16.msra.mxu0 0
    %449 = vmatpush.bf16.msra.mxu0 0
    %450 = vmatpush.bf16.msra.mxu0 0
    %451 = vmatpush.bf16.msra.mxu0 %v316
    %452 = vmatpush.bf16.msra.mxu0 %v315
    %453 = vmatmul.bf16.gmra.mxu0 %v443
    %v454 = vpop.f32.mrf.mxu0
    %v455 = vadd.f32 0.0, %v454
    %v456 = vpop.f32.mrf.mxu0
    %457 = vdwg.mxu0
    %v459 = vrot.slane %v455, 7
    %v462 = vadd.f32 %v276, %v459
    %v463 = vadd.f32 %v278, %v455
    %v464 = vxor.u32 %v462, 2147483648
    %v465 = vxor.u32 %v463, 2147483648
    %v466 = vmul.f32 %v464, 1.442695
    %v467 = vpow.pop %v466
    %v468 = vmul.f32 %v465, 1.442695
    %v469 = vpow.pop %v468
    %v470 = vadd.f32 %v467, 1.0
    %v471 = vadd.f32 %v469, 1.0
    %v472 = vrcp.pop %v470
    %v473 = vmul.f32 %v470, %v472
    %v474 = vsub.f32 1.0, %v473
    %v475 = vmul.f32 %v472, %v474
    %v476 = vadd.f32 %v472, %v475
    %vm477 = vweird.f32 %v470
    %vm478 = vweird.f32 %v472
    %vm479 = vmor %vm477, %vm478
    %v480 = vsel %vm479, %v472, %v476
    %v481 = vand.u32 2147483647, %v470
    %vm482 = vcmp.eq.f32.partialorder %v481, 8.507059e+37
    %v483 = vand.u32 %v470, 2147483648
    %v484 = vor.u32 1.1754944e-38, %v483
    %v485 = vsel %vm482, %v484, %v480
    %v486 = vmul.f32 1.0, %v485
    %v487 = vrcp.pop %v471
    %v488 = vmul.f32 %v471, %v487
    %v489 = vsub.f32 1.0, %v488
    %v490 = vmul.f32 %v487, %v489
    %v491 = vadd.f32 %v487, %v490
    %vm492 = vweird.f32 %v471
    %vm493 = vweird.f32 %v487
    %vm494 = vmor %vm492, %vm493
    %v495 = vsel %vm494, %v487, %v491
    %v496 = vand.u32 2147483647, %v471
    %vm497 = vcmp.eq.f32.partialorder %v496, 8.507059e+37
    %v498 = vand.u32 %v471, 2147483648
    %v499 = vor.u32 1.1754944e-38, %v498
    %v500 = vsel %vm497, %v499, %v495
    %v501 = vmul.f32 1.0, %v500
    %v502 = vadd.f32 %v455, %v382
    %v504 = vrot.slane %v502, 7
    %505 = vrot.lane.b32.xlu0 %v504, 64
    %v506 = vpop.permute.xlu0 %505
    %507 = vrot.lane.b32.xlu0 %v502, 64
    %v508 = vpop.permute.xlu0 %507
    %v511 = vmul.f32 %v486, %v506
    %v512 = vmul.f32 %v501, %v508
    %515 = vrot.lane.b32.xlu0 %v511, 64
    %v516 = vpop.permute.xlu0 %515
    %517 = vrot.lane.b32.xlu0 %v512, 64
    %v518 = vpop.permute.xlu0 %517
    %v521 = vadd.f32 %v276, %v516
    %v522 = vadd.f32 %v278, %v518
    %v523 = vtanh.pop %v521
    %v524 = vtanh.pop %v522
    %v525 = vsub.f32 1.0, %v486
    %v526 = vsub.f32 1.0, %v501
    %529 = vrot.lane.b32.xlu0 %v523, 96
    %v530 = vpop.permute.xlu0 %529
    %531 = vrot.lane.b32.xlu0 %v524, 96
    %v532 = vpop.permute.xlu0 %531
    %v535 = vmul.f32 %v525, %v530
    %v536 = vmul.f32 %v526, %v532
    %v539 = vrot.slane %v429, 7
    %v540 = vrot.slane %v430, 7
    %v543 = vmul.f32 %v486, %v539
    %v544 = vmul.f32 %v501, %v540
    %v545 = vadd.f32 %v535, %v543
    %v546 = vadd.f32 %v536, %v544
    %v547 = vpack.c.bf16 %v545, %v545
    %v548 = vpack.c.bf16 %v546, %v546
    %v551 = vunpack.c.l.b16 %v547
    %v552 = vunpack.c.l.b16 %v548
    %v553 = vrot.slane %v551, 1
    %v554 = vsel %vm193, %v552, %v553
    %v555 = vpack.c.b16 %v554, %v554
    %556 = vrot.lane.b32.xlu0 %v555, 96
    %v557 = vpop.permute.xlu0 %556
    %v559 = vsel %vm171, %v557, 0
    %561 = vmatpush.bf16.msra.mxu0 0
    %562 = vmatpush.bf16.msra.mxu0 0
    %563 = vmatpush.bf16.msra.mxu0 0
    %564 = vmatpush.bf16.msra.mxu0 0
    %565 = vmatpush.bf16.msra.mxu0 0
    %566 = vmatpush.bf16.msra.mxu0 0
    %567 = vmatpush.bf16.msra.mxu0 %v316
    %568 = vmatpush.bf16.msra.mxu0 %v315
    %569 = vmatmul.bf16.gmra.mxu0 %v559
    %v570 = vpop.f32.mrf.mxu0
    %v571 = vadd.f32 0.0, %v570
    %v572 = vpop.f32.mrf.mxu0
    %573 = vdwg.mxu0
    %v575 = vrot.slane %v571, 6
    %v576 = vrot.slane %v571, 7
    %v579 = vadd.f32 %v276, %v575
    %v580 = vadd.f32 %v278, %v576
    %v581 = vxor.u32 %v579, 2147483648
    %v582 = vxor.u32 %v580, 2147483648
    %v583 = vmul.f32 %v581, 1.442695
    %v584 = vpow.pop %v583
    %v585 = vmul.f32 %v582, 1.442695
    %v586 = vpow.pop %v585
    %v587 = vadd.f32 %v584, 1.0
    %v588 = vadd.f32 %v586, 1.0
    %v589 = vrcp.pop %v587
    %v590 = vmul.f32 %v587, %v589
    %v591 = vsub.f32 1.0, %v590
    %v592 = vmul.f32 %v589, %v591
    %v593 = vadd.f32 %v589, %v592
    %vm594 = vweird.f32 %v587
    %vm595 = vweird.f32 %v589
    %vm596 = vmor %vm594, %vm595
    %v597 = vsel %vm596, %v589, %v593
    %v598 = vand.u32 2147483647, %v587
    %vm599 = vcmp.eq.f32.partialorder %v598, 8.507059e+37
    %v600 = vand.u32 %v587, 2147483648
    %v601 = vor.u32 1.1754944e-38, %v600
    %v602 = vsel %vm599, %v601, %v597
    %v603 = vmul.f32 1.0, %v602
    %v604 = vrcp.pop %v588
    %v605 = vmul.f32 %v588, %v604
    %v606 = vsub.f32 1.0, %v605
    %v607 = vmul.f32 %v604, %v606
    %v608 = vadd.f32 %v604, %v607
    %vm609 = vweird.f32 %v588
    %vm610 = vweird.f32 %v604
    %vm611 = vmor %vm609, %vm610
    %v612 = vsel %vm611, %v604, %v608
    %v613 = vand.u32 2147483647, %v588
    %vm614 = vcmp.eq.f32.partialorder %v613, 8.507059e+37
    %v615 = vand.u32 %v588, 2147483648
    %v616 = vor.u32 1.1754944e-38, %v615
    %v617 = vsel %vm614, %v616, %v612
    %v618 = vmul.f32 1.0, %v617
    %v619 = vadd.f32 %v571, %v382
    %v621 = vrot.slane %v619, 6
    %v622 = vrot.slane %v619, 7
    %623 = vrot.lane.b32.xlu0 %v621, 64
    %v624 = vpop.permute.xlu0 %623
    %625 = vrot.lane.b32.xlu0 %v622, 64
    %v626 = vpop.permute.xlu0 %625
    %v629 = vmul.f32 %v603, %v624
    %v630 = vmul.f32 %v618, %v626
    %633 = vrot.lane.b32.xlu0 %v629, 64
    %v634 = vpop.permute.xlu0 %633
    %635 = vrot.lane.b32.xlu0 %v630, 64
    %v636 = vpop.permute.xlu0 %635
    %v639 = vadd.f32 %v276, %v634
    %v640 = vadd.f32 %v278, %v636
    %v641 = vtanh.pop %v639
    %v642 = vtanh.pop %v640
    %v643 = vsub.f32 1.0, %v603
    %v644 = vsub.f32 1.0, %v618
    %647 = vrot.lane.b32.xlu0 %v641, 96
    %v648 = vpop.permute.xlu0 %647
    %649 = vrot.lane.b32.xlu0 %v642, 96
    %v650 = vpop.permute.xlu0 %649
    %v653 = vmul.f32 %v643, %v648
    %v654 = vmul.f32 %v644, %v650
    %v657 = vrot.slane %v545, 7
    %v658 = vrot.slane %v546, 7
    %v661 = vmul.f32 %v603, %v657
    %v662 = vmul.f32 %v618, %v658
    %v663 = vadd.f32 %v653, %v661
    %v664 = vadd.f32 %v654, %v662
    %v665 = vpack.c.bf16 %v663, %v663
    %v666 = vpack.c.bf16 %v664, %v664
    %v669 = vunpack.c.l.b16 %v665
    %v670 = vunpack.c.l.b16 %v666
    %v671 = vrot.slane %v669, 2
    %v672 = vrot.slane %v670, 1
    %v673 = vsel %vm193, %v672, %v671
    %v674 = vpack.c.b16 %v673, %v673
    %675 = vrot.lane.b32.xlu0 %v674, 96
    %v676 = vpop.permute.xlu0 %675
    %v678 = vsel %vm171, %v676, 0
    %680 = vmatpush.bf16.msra.mxu0 0
    %681 = vmatpush.bf16.msra.mxu0 0
    %682 = vmatpush.bf16.msra.mxu0 0
    %683 = vmatpush.bf16.msra.mxu0 0
    %684 = vmatpush.bf16.msra.mxu0 0
    %685 = vmatpush.bf16.msra.mxu0 0
    %686 = vmatpush.bf16.msra.mxu0 %v316
    %687 = vmatpush.bf16.msra.mxu0 %v315
    %688 = vmatmul.bf16.gmra.mxu0 %v678
    %v689 = vpop.f32.mrf.mxu0
    %v690 = vadd.f32 0.0, %v689
    %v691 = vpop.f32.mrf.mxu0
    %692 = vdwg.mxu0
    %v694 = vrot.slane %v690, 5
    %v695 = vrot.slane %v690, 6
    %v698 = vadd.f32 %v276, %v694
    %v699 = vadd.f32 %v278, %v695
    %v700 = vxor.u32 %v698, 2147483648
    %v701 = vxor.u32 %v699, 2147483648
    %v702 = vmul.f32 %v700, 1.442695
    %v703 = vpow.pop %v702
    %v704 = vmul.f32 %v701, 1.442695
    %v705 = vpow.pop %v704
    %v706 = vadd.f32 %v703, 1.0
    %v707 = vadd.f32 %v705, 1.0
    %v708 = vrcp.pop %v706
    %v709 = vmul.f32 %v706, %v708
    %v710 = vsub.f32 1.0, %v709
    %v711 = vmul.f32 %v708, %v710
    %v712 = vadd.f32 %v708, %v711
    %vm713 = vweird.f32 %v706
    %vm714 = vweird.f32 %v708
    %vm715 = vmor %vm713, %vm714
    %v716 = vsel %vm715, %v708, %v712
    %v717 = vand.u32 2147483647, %v706
    %vm718 = vcmp.eq.f32.partialorder %v717, 8.507059e+37
    %v719 = vand.u32 %v706, 2147483648
    %v720 = vor.u32 1.1754944e-38, %v719
    %v721 = vsel %vm718, %v720, %v716
    %v722 = vmul.f32 1.0, %v721
    %v723 = vrcp.pop %v707
    %v724 = vmul.f32 %v707, %v723
    %v725 = vsub.f32 1.0, %v724
    %v726 = vmul.f32 %v723, %v725
    %v727 = vadd.f32 %v723, %v726
    %vm728 = vweird.f32 %v707
    %vm729 = vweird.f32 %v723
    %vm730 = vmor %vm728, %vm729
    %v731 = vsel %vm730, %v723, %v727
    %v732 = vand.u32 2147483647, %v707
    %vm733 = vcmp.eq.f32.partialorder %v732, 8.507059e+37
    %v734 = vand.u32 %v707, 2147483648
    %v735 = vor.u32 1.1754944e-38, %v734
    %v736 = vsel %vm733, %v735, %v731
    %v737 = vmul.f32 1.0, %v736
    %v738 = vadd.f32 %v690, %v382
    %v740 = vrot.slane %v738, 5
    %v741 = vrot.slane %v738, 6
    %742 = vrot.lane.b32.xlu0 %v740, 64
    %v743 = vpop.permute.xlu0 %742
    %744 = vrot.lane.b32.xlu0 %v741, 64
    %v745 = vpop.permute.xlu0 %744
    %v748 = vmul.f32 %v722, %v743
    %v749 = vmul.f32 %v737, %v745
    %752 = vrot.lane.b32.xlu0 %v748, 64
    %v753 = vpop.permute.xlu0 %752
    %754 = vrot.lane.b32.xlu0 %v749, 64
    %v755 = vpop.permute.xlu0 %754
    %v758 = vadd.f32 %v276, %v753
    %v759 = vadd.f32 %v278, %v755
    %v760 = vtanh.pop %v758
    %v761 = vtanh.pop %v759
    %v762 = vsub.f32 1.0, %v722
    %v763 = vsub.f32 1.0, %v737
    %766 = vrot.lane.b32.xlu0 %v760, 96
    %v767 = vpop.permute.xlu0 %766
    %768 = vrot.lane.b32.xlu0 %v761, 96
    %v769 = vpop.permute.xlu0 %768
    %v772 = vmul.f32 %v762, %v767
    %v773 = vmul.f32 %v763, %v769
    %v776 = vrot.slane %v663, 7
    %v777 = vrot.slane %v664, 7
    %v780 = vmul.f32 %v722, %v776
    %v781 = vmul.f32 %v737, %v777
    %v782 = vadd.f32 %v772, %v780
    %v783 = vadd.f32 %v773, %v781
    %v784 = vpack.c.bf16 %v782, %v782
    %v785 = vpack.c.bf16 %v783, %v783
    %v788 = vunpack.c.l.b16 %v784
    %v789 = vunpack.c.l.b16 %v785
    %v790 = vrot.slane %v788, 3
    %v791 = vrot.slane %v789, 2
    %v792 = vsel %vm193, %v791, %v790
    %v793 = vpack.c.b16 %v792, %v792
    %794 = vrot.lane.b32.xlu0 %v793, 96
    %v795 = vpop.permute.xlu0 %794
    %v797 = vsel %vm171, %v795, 0
    %799 = vmatpush.bf16.msra.mxu0 0
    %800 = vmatpush.bf16.msra.mxu0 0
    %801 = vmatpush.bf16.msra.mxu0 0
    %802 = vmatpush.bf16.msra.mxu0 0
    %803 = vmatpush.bf16.msra.mxu0 0
    %804 = vmatpush.bf16.msra.mxu0 0
    %805 = vmatpush.bf16.msra.mxu0 %v316
    %806 = vmatpush.bf16.msra.mxu0 %v315
    %807 = vmatmul.bf16.gmra.mxu0 %v797
    %v808 = vpop.f32.mrf.mxu0
    %v809 = vadd.f32 0.0, %v808
    %v810 = vpop.f32.mrf.mxu0
    %811 = vdwg.mxu0
    %v813 = vrot.slane %v809, 4
    %v814 = vrot.slane %v809, 5
    %v817 = vadd.f32 %v276, %v813
    %v818 = vadd.f32 %v278, %v814
    %v819 = vxor.u32 %v817, 2147483648
    %v820 = vxor.u32 %v818, 2147483648
    %v821 = vmul.f32 %v819, 1.442695
    %v822 = vpow.pop %v821
    %v823 = vmul.f32 %v820, 1.442695
    %v824 = vpow.pop %v823
    %v825 = vadd.f32 %v822, 1.0
    %v826 = vadd.f32 %v824, 1.0
    %v827 = vrcp.pop %v825
    %v828 = vmul.f32 %v825, %v827
    %v829 = vsub.f32 1.0, %v828
    %v830 = vmul.f32 %v827, %v829
    %v831 = vadd.f32 %v827, %v830
    %vm832 = vweird.f32 %v825
    %vm833 = vweird.f32 %v827
    %vm834 = vmor %vm832, %vm833
    %v835 = vsel %vm834, %v827, %v831
    %v836 = vand.u32 2147483647, %v825
    %vm837 = vcmp.eq.f32.partialorder %v836, 8.507059e+37
    %v838 = vand.u32 %v825, 2147483648
    %v839 = vor.u32 1.1754944e-38, %v838
    %v840 = vsel %vm837, %v839, %v835
    %v841 = vmul.f32 1.0, %v840
    %v842 = vrcp.pop %v826
    %v843 = vmul.f32 %v826, %v842
    %v844 = vsub.f32 1.0, %v843
    %v845 = vmul.f32 %v842, %v844
    %v846 = vadd.f32 %v842, %v845
    %vm847 = vweird.f32 %v826
    %vm848 = vweird.f32 %v842
    %vm849 = vmor %vm847, %vm848
    %v850 = vsel %vm849, %v842, %v846
    %v851 = vand.u32 2147483647, %v826
    %vm852 = vcmp.eq.f32.partialorder %v851, 8.507059e+37
    %v853 = vand.u32 %v826, 2147483648
    %v854 = vor.u32 1.1754944e-38, %v853
    %v855 = vsel %vm852, %v854, %v850
    %v856 = vmul.f32 1.0, %v855
    %v857 = vadd.f32 %v809, %v382
    %v859 = vrot.slane %v857, 4
    %v860 = vrot.slane %v857, 5
    %861 = vrot.lane.b32.xlu0 %v859, 64
    %v862 = vpop.permute.xlu0 %861
    %863 = vrot.lane.b32.xlu0 %v860, 64
    %v864 = vpop.permute.xlu0 %863
    %v867 = vmul.f32 %v841, %v862
    %v868 = vmul.f32 %v856, %v864
    %871 = vrot.lane.b32.xlu0 %v867, 64
    %v872 = vpop.permute.xlu0 %871
    %873 = vrot.lane.b32.xlu0 %v868, 64
    %v874 = vpop.permute.xlu0 %873
    %v877 = vadd.f32 %v276, %v872
    %v878 = vadd.f32 %v278, %v874
    %v879 = vtanh.pop %v877
    %v880 = vtanh.pop %v878
    %v881 = vsub.f32 1.0, %v841
    %v882 = vsub.f32 1.0, %v856
    %885 = vrot.lane.b32.xlu0 %v879, 96
    %v886 = vpop.permute.xlu0 %885
    %887 = vrot.lane.b32.xlu0 %v880, 96
    %v888 = vpop.permute.xlu0 %887
    %v891 = vmul.f32 %v881, %v886
    %v892 = vmul.f32 %v882, %v888
    %v895 = vrot.slane %v782, 7
    %v896 = vrot.slane %v783, 7
    %v899 = vmul.f32 %v841, %v895
    %v900 = vmul.f32 %v856, %v896
    %v901 = vadd.f32 %v891, %v899
    %v902 = vadd.f32 %v892, %v900
    %v903 = vpack.c.bf16 %v901, %v901
    %v904 = vpack.c.bf16 %v902, %v902
    %v907 = vunpack.c.l.b16 %v903
    %v908 = vunpack.c.l.b16 %v904
    %v909 = vrot.slane %v907, 4
    %v910 = vrot.slane %v908, 3
    %v911 = vsel %vm193, %v910, %v909
    %v912 = vpack.c.b16 %v911, %v911
    %913 = vrot.lane.b32.xlu0 %v912, 96
    %v914 = vpop.permute.xlu0 %913
    %v916 = vsel %vm171, %v914, 0
    %918 = vmatpush.bf16.msra.mxu0 0
    %919 = vmatpush.bf16.msra.mxu0 0
    %920 = vmatpush.bf16.msra.mxu0 0
    %921 = vmatpush.bf16.msra.mxu0 0
    %922 = vmatpush.bf16.msra.mxu0 0
    %923 = vmatpush.bf16.msra.mxu0 0
    %924 = vmatpush.bf16.msra.mxu0 %v316
    %925 = vmatpush.bf16.msra.mxu0 %v315
    %926 = vmatmul.bf16.gmra.mxu0 %v916
    %v927 = vpop.f32.mrf.mxu0
    %v928 = vadd.f32 0.0, %v927
    %v929 = vpop.f32.mrf.mxu0
    %930 = vdwg.mxu0
    %v932 = vrot.slane %v928, 3
    %v933 = vrot.slane %v928, 4
    %v936 = vadd.f32 %v276, %v932
    %v937 = vadd.f32 %v278, %v933
    %v938 = vxor.u32 %v936, 2147483648
    %v939 = vxor.u32 %v937, 2147483648
    %v940 = vmul.f32 %v938, 1.442695
    %v941 = vpow.pop %v940
    %v942 = vmul.f32 %v939, 1.442695
    %v943 = vpow.pop %v942
    %v944 = vadd.f32 %v941, 1.0
    %v945 = vadd.f32 %v943, 1.0
    %v946 = vrcp.pop %v944
    %v947 = vmul.f32 %v944, %v946
    %v948 = vsub.f32 1.0, %v947
    %v949 = vmul.f32 %v946, %v948
    %v950 = vadd.f32 %v946, %v949
    %vm951 = vweird.f32 %v944
    %vm952 = vweird.f32 %v946
    %vm953 = vmor %vm951, %vm952
    %v954 = vsel %vm953, %v946, %v950
    %v955 = vand.u32 2147483647, %v944
    %vm956 = vcmp.eq.f32.partialorder %v955, 8.507059e+37
    %v957 = vand.u32 %v944, 2147483648
    %v958 = vor.u32 1.1754944e-38, %v957
    %v959 = vsel %vm956, %v958, %v954
    %v960 = vmul.f32 1.0, %v959
    %v961 = vrcp.pop %v945
    %v962 = vmul.f32 %v945, %v961
    %v963 = vsub.f32 1.0, %v962
    %v964 = vmul.f32 %v961, %v963
    %v965 = vadd.f32 %v961, %v964
    %vm966 = vweird.f32 %v945
    %vm967 = vweird.f32 %v961
    %vm968 = vmor %vm966, %vm967
    %v969 = vsel %vm968, %v961, %v965
    %v970 = vand.u32 2147483647, %v945
    %vm971 = vcmp.eq.f32.partialorder %v970, 8.507059e+37
    %v972 = vand.u32 %v945, 2147483648
    %v973 = vor.u32 1.1754944e-38, %v972
    %v974 = vsel %vm971, %v973, %v969
    %v975 = vmul.f32 1.0, %v974
    %v976 = vadd.f32 %v928, %v382
    %v978 = vrot.slane %v976, 3
    %v979 = vrot.slane %v976, 4
    %980 = vrot.lane.b32.xlu0 %v978, 64
    %v981 = vpop.permute.xlu0 %980
    %982 = vrot.lane.b32.xlu0 %v979, 64
    %v983 = vpop.permute.xlu0 %982
    %v986 = vmul.f32 %v960, %v981
    %v987 = vmul.f32 %v975, %v983
    %990 = vrot.lane.b32.xlu0 %v986, 64
    %v991 = vpop.permute.xlu0 %990
    %992 = vrot.lane.b32.xlu0 %v987, 64
    %v993 = vpop.permute.xlu0 %992
    %v996 = vadd.f32 %v276, %v991
    %v997 = vadd.f32 %v278, %v993
    %v998 = vtanh.pop %v996
    %v999 = vtanh.pop %v997
    %v1000 = vsub.f32 1.0, %v960
    %v1001 = vsub.f32 1.0, %v975
    %1004 = vrot.lane.b32.xlu0 %v998, 96
    %v1005 = vpop.permute.xlu0 %1004
    %1006 = vrot.lane.b32.xlu0 %v999, 96
    %v1007 = vpop.permute.xlu0 %1006
    %v1010 = vmul.f32 %v1000, %v1005
    %v1011 = vmul.f32 %v1001, %v1007
    %v1014 = vrot.slane %v901, 7
    %v1015 = vrot.slane %v902, 7
    %v1018 = vmul.f32 %v960, %v1014
    %v1019 = vmul.f32 %v975, %v1015
    %v1020 = vadd.f32 %v1010, %v1018
    %v1021 = vadd.f32 %v1011, %v1019
    %v1022 = vpack.c.bf16 %v1020, %v1020
    %v1023 = vpack.c.bf16 %v1021, %v1021
    %v1026 = vunpack.c.l.b16 %v1022
    %v1027 = vunpack.c.l.b16 %v1023
    %v1028 = vrot.slane %v1026, 5
    %v1029 = vrot.slane %v1027, 4
    %v1030 = vsel %vm193, %v1029, %v1028
    %v1031 = vpack.c.b16 %v1030, %v1030
    %1032 = vrot.lane.b32.xlu0 %v1031, 96
    %v1033 = vpop.permute.xlu0 %1032
    %v1035 = vsel %vm171, %v1033, 0
    %1037 = vmatpush.bf16.msra.mxu0 0
    %1038 = vmatpush.bf16.msra.mxu0 0
    %1039 = vmatpush.bf16.msra.mxu0 0
    %1040 = vmatpush.bf16.msra.mxu0 0
    %1041 = vmatpush.bf16.msra.mxu0 0
    %1042 = vmatpush.bf16.msra.mxu0 0
    %1043 = vmatpush.bf16.msra.mxu0 %v316
    %1044 = vmatpush.bf16.msra.mxu0 %v315
    %1045 = vmatmul.bf16.gmra.mxu0 %v1035
    %v1046 = vpop.f32.mrf.mxu0
    %v1047 = vadd.f32 0.0, %v1046
    %v1048 = vpop.f32.mrf.mxu0
    %1049 = vdwg.mxu0
    %v1051 = vrot.slane %v1047, 2
    %v1052 = vrot.slane %v1047, 3
    %v1055 = vadd.f32 %v276, %v1051
    %v1056 = vadd.f32 %v278, %v1052
    %v1057 = vxor.u32 %v1055, 2147483648
    %v1058 = vxor.u32 %v1056, 2147483648
    %v1059 = vmul.f32 %v1057, 1.442695
    %v1060 = vpow.pop %v1059
    %v1061 = vmul.f32 %v1058, 1.442695
    %v1062 = vpow.pop %v1061
    %v1063 = vadd.f32 %v1060, 1.0
    %v1064 = vadd.f32 %v1062, 1.0
    %v1065 = vrcp.pop %v1063
    %v1066 = vmul.f32 %v1063, %v1065
    %v1067 = vsub.f32 1.0, %v1066
    %v1068 = vmul.f32 %v1065, %v1067
    %v1069 = vadd.f32 %v1065, %v1068
    %vm1070 = vweird.f32 %v1063
    %vm1071 = vweird.f32 %v1065
    %vm1072 = vmor %vm1070, %vm1071
    %v1073 = vsel %vm1072, %v1065, %v1069
    %v1074 = vand.u32 2147483647, %v1063
    %vm1075 = vcmp.eq.f32.partialorder %v1074, 8.507059e+37
    %v1076 = vand.u32 %v1063, 2147483648
    %v1077 = vor.u32 1.1754944e-38, %v1076
    %v1078 = vsel %vm1075, %v1077, %v1073
    %v1079 = vmul.f32 1.0, %v1078
    %v1080 = vrcp.pop %v1064
    %v1081 = vmul.f32 %v1064, %v1080
    %v1082 = vsub.f32 1.0, %v1081
    %v1083 = vmul.f32 %v1080, %v1082
    %v1084 = vadd.f32 %v1080, %v1083
    %vm1085 = vweird.f32 %v1064
    %vm1086 = vweird.f32 %v1080
    %vm1087 = vmor %vm1085, %vm1086
    %v1088 = vsel %vm1087, %v1080, %v1084
    %v1089 = vand.u32 2147483647, %v1064
    %vm1090 = vcmp.eq.f32.partialorder %v1089, 8.507059e+37
    %v1091 = vand.u32 %v1064, 2147483648
    %v1092 = vor.u32 1.1754944e-38, %v1091
    %v1093 = vsel %vm1090, %v1092, %v1088
    %v1094 = vmul.f32 1.0, %v1093
    %v1095 = vadd.f32 %v1047, %v382
    %v1097 = vrot.slane %v1095, 2
    %v1098 = vrot.slane %v1095, 3
    %1099 = vrot.lane.b32.xlu0 %v1097, 64
    %v1100 = vpop.permute.xlu0 %1099
    %1101 = vrot.lane.b32.xlu0 %v1098, 64
    %v1102 = vpop.permute.xlu0 %1101
    %v1105 = vmul.f32 %v1079, %v1100
    %v1106 = vmul.f32 %v1094, %v1102
    %1109 = vrot.lane.b32.xlu0 %v1105, 64
    %v1110 = vpop.permute.xlu0 %1109
    %1111 = vrot.lane.b32.xlu0 %v1106, 64
    %v1112 = vpop.permute.xlu0 %1111
    %v1115 = vadd.f32 %v276, %v1110
    %v1116 = vadd.f32 %v278, %v1112
    %v1117 = vtanh.pop %v1115
    %v1118 = vtanh.pop %v1116
    %v1119 = vsub.f32 1.0, %v1079
    %v1120 = vsub.f32 1.0, %v1094
    %1123 = vrot.lane.b32.xlu0 %v1117, 96
    %v1124 = vpop.permute.xlu0 %1123
    %1125 = vrot.lane.b32.xlu0 %v1118, 96
    %v1126 = vpop.permute.xlu0 %1125
    %v1129 = vmul.f32 %v1119, %v1124
    %v1130 = vmul.f32 %v1120, %v1126
    %v1133 = vrot.slane %v1020, 7
    %v1134 = vrot.slane %v1021, 7
    %v1137 = vmul.f32 %v1079, %v1133
    %v1138 = vmul.f32 %v1094, %v1134
    %v1139 = vadd.f32 %v1129, %v1137
    %v1140 = vadd.f32 %v1130, %v1138
    %v1141 = vpack.c.bf16 %v1139, %v1139
    %v1142 = vpack.c.bf16 %v1140, %v1140
    %v1145 = vunpack.c.l.b16 %v1141
    %v1146 = vunpack.c.l.b16 %v1142
    %v1147 = vrot.slane %v1145, 6
    %v1148 = vrot.slane %v1146, 5
    %v1149 = vsel %vm193, %v1148, %v1147
    %v1150 = vpack.c.b16 %v1149, %v1149
    %1151 = vrot.lane.b32.xlu0 %v1150, 96
    %v1152 = vpop.permute.xlu0 %1151
    %v1154 = vsel %vm171, %v1152, 0
    %1156 = vmatpush.bf16.msra.mxu0 0
    %1157 = vmatpush.bf16.msra.mxu0 0
    %1158 = vmatpush.bf16.msra.mxu0 0
    %1159 = vmatpush.bf16.msra.mxu0 0
    %1160 = vmatpush.bf16.msra.mxu0 0
    %1161 = vmatpush.bf16.msra.mxu0 0
    %1162 = vmatpush.bf16.msra.mxu0 %v316
    %1163 = vmatpush.bf16.msra.mxu0 %v315
    %1164 = vmatmul.bf16.gmra.mxu0 %v1154
    %v1165 = vpop.f32.mrf.mxu0
    %v1166 = vadd.f32 0.0, %v1165
    %v1167 = vpop.f32.mrf.mxu0
    %1168 = vdwg.mxu0
    %v1170 = vrot.slane %v1166, 1
    %v1171 = vrot.slane %v1166, 2
    %v1174 = vadd.f32 %v276, %v1170
    %v1175 = vadd.f32 %v278, %v1171
    %v1176 = vxor.u32 %v1174, 2147483648
    %v1177 = vxor.u32 %v1175, 2147483648
    %v1178 = vmul.f32 %v1176, 1.442695
    %v1179 = vpow.pop %v1178
    %v1180 = vmul.f32 %v1177, 1.442695
    %v1181 = vpow.pop %v1180
    %v1182 = vadd.f32 %v1179, 1.0
    %v1183 = vadd.f32 %v1181, 1.0
    %v1184 = vrcp.pop %v1182
    %v1185 = vmul.f32 %v1182, %v1184
    %v1186 = vsub.f32 1.0, %v1185
    %v1187 = vmul.f32 %v1184, %v1186
    %v1188 = vadd.f32 %v1184, %v1187
    %vm1189 = vweird.f32 %v1182
    %vm1190 = vweird.f32 %v1184
    %vm1191 = vmor %vm1189, %vm1190
    %v1192 = vsel %vm1191, %v1184, %v1188
    %v1193 = vand.u32 2147483647, %v1182
    %vm1194 = vcmp.eq.f32.partialorder %v1193, 8.507059e+37
    %v1195 = vand.u32 %v1182, 2147483648
    %v1196 = vor.u32 1.1754944e-38, %v1195
    %v1197 = vsel %vm1194, %v1196, %v1192
    %v1198 = vmul.f32 1.0, %v1197
    %v1199 = vrcp.pop %v1183
    %v1200 = vmul.f32 %v1183, %v1199
    %v1201 = vsub.f32 1.0, %v1200
    %v1202 = vmul.f32 %v1199, %v1201
    %v1203 = vadd.f32 %v1199, %v1202
    %vm1204 = vweird.f32 %v1183
    %vm1205 = vweird.f32 %v1199
    %vm1206 = vmor %vm1204, %vm1205
    %v1207 = vsel %vm1206, %v1199, %v1203
    %v1208 = vand.u32 2147483647, %v1183
    %vm1209 = vcmp.eq.f32.partialorder %v1208, 8.507059e+37
    %v1210 = vand.u32 %v1183, 2147483648
    %v1211 = vor.u32 1.1754944e-38, %v1210
    %v1212 = vsel %vm1209, %v1211, %v1207
    %v1213 = vmul.f32 1.0, %v1212
    %v1214 = vadd.f32 %v1166, %v382
    %v1216 = vrot.slane %v1214, 1
    %v1217 = vrot.slane %v1214, 2
    %1218 = vrot.lane.b32.xlu0 %v1216, 64
    %v1219 = vpop.permute.xlu0 %1218
    %1220 = vrot.lane.b32.xlu0 %v1217, 64
    %v1221 = vpop.permute.xlu0 %1220
    %v1224 = vmul.f32 %v1198, %v1219
    %v1225 = vmul.f32 %v1213, %v1221
    %1228 = vrot.lane.b32.xlu0 %v1224, 64
    %v1229 = vpop.permute.xlu0 %1228
    %1230 = vrot.lane.b32.xlu0 %v1225, 64
    %v1231 = vpop.permute.xlu0 %1230
    %v1234 = vadd.f32 %v276, %v1229
    %v1235 = vadd.f32 %v278, %v1231
    %v1236 = vtanh.pop %v1234
    %v1237 = vtanh.pop %v1235
    %v1238 = vsub.f32 1.0, %v1198
    %v1239 = vsub.f32 1.0, %v1213
    %1242 = vrot.lane.b32.xlu0 %v1236, 96
    %v1243 = vpop.permute.xlu0 %1242
    %1244 = vrot.lane.b32.xlu0 %v1237, 96
    %v1245 = vpop.permute.xlu0 %1244
    %v1248 = vmul.f32 %v1238, %v1243
    %v1249 = vmul.f32 %v1239, %v1245
    %v1252 = vrot.slane %v1139, 7
    %v1253 = vrot.slane %v1140, 7
    %v1256 = vmul.f32 %v1198, %v1252
    %v1257 = vmul.f32 %v1213, %v1253
    %v1258 = vadd.f32 %v1248, %v1256
    %v1259 = vadd.f32 %v1249, %v1257
    %v1260 = vsel %vm193, %v540, %v429
    %v1262 = vrot.slane %v546, 6
    %vm1263 = vcmask 1043459
    %v1264 = vsel %vm1263, %v1262, %v657
    %v1266 = vrot.slane %v663, 6
    %v1267 = vrot.slane %v664, 5
    %vm1268 = vcmask 1045509
    %v1269 = vsel %vm1268, %v1267, %v1266
    %v1271 = vrot.slane %v782, 5
    %v1272 = vrot.slane %v783, 4
    %vm1273 = vcmask 1047559
    %v1274 = vsel %vm1273, %v1272, %v1271
    %v1276 = vrot.slane %v901, 4
    %v1277 = vrot.slane %v902, 3
    %v1278 = vsel %vm193, %v1277, %v1276
    %v1280 = vrot.slane %v1020, 3
    %v1281 = vrot.slane %v1021, 2
    %v1282 = vsel %vm1263, %v1281, %v1280
    %v1284 = vrot.slane %v1139, 2
    %v1285 = vrot.slane %v1140, 1
    %v1286 = vsel %vm1268, %v1285, %v1284
    %v1290 = vrot.slane %v1258, 1
    %v1291 = vsel %vm1273, %v1259, %v1290
    %vm1293 = vcmask 1041408
    %v1294 = vsel %vm1293, %v1260, %v1264
    %v1295 = vsel %vm95, %v1294, %v1269
    %vm1296 = vcmask 1045504
    %v1297 = vsel %vm1296, %v1295, %v1274
    %v1298 = vsel %vm1293, %v1278, %v1282
    %v1299 = vsel %vm95, %v1298, %v1286
    %v1300 = vsel %vm1296, %v1299, %v1291
    %v1301 = vpack.c.bf16 %v1300, %v1297
    %v1302 = vperm.slane %v65, 0
    %1304 = vrot.lane.b32.xlu0 %v1301, 96
    %v1305 = vpop.permute.xlu0 %1304
    %v1310 = vunpack.c.l.b16 %v53
    %v1311 = vunpack.c.l.b16 %v54
    %v1312 = vunpack.c.l.b16 %v55
    %v1313 = vunpack.c.l.b16 %v56
    %v1314 = vpack.c.b16 %v1311, %v1310
    %v1315 = vpack.c.b16 %v1313, %v1312
    %v1319 = vsel %vm171, %v1305, 0
    %1321 = vmatpush.bf16.msra.mxu0 0
    %1322 = vmatpush.bf16.msra.mxu0 0
    %1323 = vmatpush.bf16.msra.mxu0 0
    %1324 = vmatpush.bf16.msra.mxu0 0
    %1325 = vmatpush.bf16.msra.mxu0 0
    %1326 = vmatpush.bf16.msra.mxu0 0
    %1327 = vmatpush.bf16.msra.mxu0 %v1315
    %1328 = vmatpush.bf16.msra.mxu0 %v1314
    %1329 = vmatmul.bf16.gmra.mxu0 %v1319
    %v1330 = vpop.f32.mrf.mxu0
    %v1331 = vadd.f32 %v1302, %v1330
    %v1332 = vpop.f32.mrf.mxu0
    %v1333 = vadd.f32 %v1302, %v1332
    %1334 = vdwg.mxu0
    %1335 = vst.msk [vmem:[%s4] sm:$0xff] %vm91, %v1331
    %1336 = vst.msk [vmem:[%s4 + $0x8] sm:$0xff] %vm91, %v1333
    %v1337 = vperm.slane %v66, 0
    %v1340 = vunpack.c.l.b16 %v57
    %v1341 = vunpack.c.l.b16 %v58
    %v1342 = vpack.c.b16 %v1341, %v1340
    %1344 = vmatpush.bf16.msra.mxu0 0
    %1345 = vmatpush.bf16.msra.mxu0 0
    %1346 = vmatpush.bf16.msra.mxu0 0
    %1347 = vmatpush.bf16.msra.mxu0 0
    %1348 = vmatpush.bf16.msra.mxu0 0
    %1349 = vmatpush.bf16.msra.mxu0 0
    %1350 = vmatpush.bf16.msra.mxu0 0
    %1351 = vmatpush.bf16.msra.mxu0 %v1342
    %1352 = vmatmul.bf16.gmra.mxu0 %v290
    %v1353 = vpop.f32.mrf.mxu0
    %v1354 = vadd.f32 %v1337, %v1353
    %v1355 = vpop.f32.mrf.mxu0
    %1356 = vdwg.mxu0
    %v1357 = vmax.f32 %v1354, 0.0
    %v1358 = vperm.slane %v60, 0
    %v1359 = vmul.f32 %v1357, %v1358
    %vm1360 = vcmask 254976
    %v1361 = vsel %vm1360, %v1359, 0.0
    %1362 = vadd.xlane.f32.xlu0 %v1361
    %v1363 = vpop.xlane.xlu0 %1362
    %v1364 = vadd.f32 %v1363, %v113
    %1366 = vset.pattern.permute.xlu0 1
    %1367 = vperm.xlu0 %1366, %v1364
    %v1368 = vpop.permute.xlu0 %1367
    %v1370 = vadd.f32 %v1368, 0.0
    %1372 = vrot.lane.b32.xlu0 %v221, 16
    %v1373 = vpop.permute.xlu0 %1372
    %v1375 = vsel %vm288, %v236, %v1373
    %v1376 = vsel %vm171, %v1375, %v1373
    %vm1377 = vcmask 392192
    %v1378 = vsel %vm1377, %v1376, %v1370
    %vm1379 = vcmask 517120
    %1380 = vst.msk [vmem:[%s3] sm:$0x3] %vm1379, %v1378
    // Predicated region
    $region18: #{gru_vae_forward.1} parent=1 // pred_check
      _
    $region19: #{gru_vae_forward.1} parent=1 // pred_check_branch
      %1382 = sbr.rel (0) target = $region21
    $region20: #{gru_vae_forward.1} parent=1 // pred_region
      _
    $region21: #{gru_vae_forward.1} parent=1 // pred_fallthru
      _
    // Predicated region
    $region22: #{gru_vae_forward.1} parent=1 // pred_check
      _
    $region23: #{gru_vae_forward.1} parent=1 // pred_check_branch
      %1384 = sbr.rel (0) target = $region25
    $region24: #{gru_vae_forward.1} parent=1 // pred_region
      _
    $region25: #{gru_vae_forward.1} parent=1 // pred_fallthru
      _
    // Predicated region
    $region26: #{gru_vae_forward.1} parent=1 // pred_check
      _
    $region27: #{gru_vae_forward.1} parent=1 // pred_check_branch
      %1386 = sbr.rel (0) target = $region29
    $region28: #{gru_vae_forward.1} parent=1 // pred_region
      _
    $region29: #{gru_vae_forward.1} parent=1 // pred_fallthru
      _
    // Predicated region
    $region30: #{gru_vae_forward.1} parent=1 // pred_check
      _
    $region31: #{gru_vae_forward.1} parent=1 // pred_check_branch
      %1388 = sbr.rel (0) target = $region33
    $region32: #{gru_vae_forward.1} parent=1 // pred_region
      _
    $region33: #{gru_vae_forward.1} parent=1 // pred_fallthru
      _
    %1389 = vsyncpa [#allocation3], 1

</llo_original>
